<compile_context>
chip_gen: v7x
topology: tpu7x:2x2x1
jax: 0.10.0
libtpu: 0.0.40
codegen_flags: <defaults>
</compile_context>

<pallas_src>
import functools

import jax
import jax.numpy as jnp
from jax.experimental import pallas as pl
from jax.experimental.pallas import tpu as pltpu

EPS = 1e-5
LANE = 128
MAX_TILE_ROWS = 2048


def _round_up(n, m):
    return ((n + m - 1) // m) * m


def _vmem_limit_bytes():
    # Generation-aware VMEM budget: ~75% of physical (v5e/v6e: 96 MiB,
    # v7x: 48 MiB), clamped to [32 MiB, 100 MiB].
    try:
        cap = pltpu.get_tpu_info().vmem_capacity_bytes
    except Exception:  # pragma: no cover - conservative fallback
        cap = 64 * 1024 * 1024
    return max(32 * 1024 * 1024, min(int(cap * 3 // 4), 100 * 1024 * 1024))


# ---------------------------------------------------------------------------
# Fused kernel.
#   grid = (2, num_tiles):
#     axis 0 (p): 0 = conv + BN2d statistics pass (y cached in VMEM),
#                 1 = folded-BN normalize + ReLU + pool pass (reads the cache).
#     axis 1 (t): row tiles over B*H*W; each tile spans whole images.
#   At (p==1, t==last) the projector and supervised head run on the pooled
#   hiddens held in VMEM scratch, and the two outputs are written.
# ---------------------------------------------------------------------------
def simclr_fused_kernel(
    patches_ref, convw_ref, g2_ref, b2_ref,
    projw_ref, projb_ref, g1_ref, b1_ref,
    supw_ref, supb_ref,
    proj_out_ref, logits_out_ref,
    stat0_ref, stat1_ref, pooled_ref, ycache_ref,
    *, num_layers, n_rows, hw, imgs_per_tile,
):
    p = pl.program_id(0)
    t = pl.program_id(1)
    last_t = pl.num_programs(1) - 1

    @pl.when(jnp.logical_and(p == 0, t == 0))
    def _init():
        stat0_ref[...] = jnp.zeros_like(stat0_ref)
        stat1_ref[...] = jnp.zeros_like(stat1_ref)
        pooled_ref[...] = jnp.zeros_like(pooled_ref)

    @pl.when(p == 0)
    def _conv_and_stats():
        # 3x3 conv as im2col matmul: bf16 operands, f32 accumulate.  Done ONCE;
        # the result is cached (bf16) for the normalize/pool pass so patches
        # are streamed from HBM a single time.
        y = jnp.dot(patches_ref[...], convw_ref[...],
                    preferred_element_type=jnp.float32)        # (TILE_M, C_pad)
        # Single-pass BN2d statistics (sum / sum of squares) in f32.
        # TODO(synk): switch to mean-shifted / Welford partials for very large
        # BHW (E[y^2] - mu^2 can cancel catastrophically).
        stat0_ref[...] += jnp.sum(y, axis=0, keepdims=True)
        stat1_ref[...] += jnp.sum(y * y, axis=0, keepdims=True)
        ycache_ref[t] = y.astype(jnp.bfloat16)

    @pl.when(jnp.logical_and(p == 1, t == 0))
    def _fold_bn():
        # Fold BN2d (training-mode batch stats) into per-channel scale/shift;
        # reuse the stats scratches to hold them for the rest of pass 1.
        inv_n = 1.0 / float(n_rows)
        mu = stat0_ref[...] * inv_n
        var = jnp.maximum(stat1_ref[...] * inv_n - mu * mu, 0.0)
        scale = g2_ref[...] * jax.lax.rsqrt(var + EPS)
        stat0_ref[...] = scale
        stat1_ref[...] = b2_ref[...] - mu * scale

    @pl.when(p == 1)
    def _normalize_pool():
        scale = stat0_ref[...]
        shift = stat1_ref[...]
        yt = ycache_ref[t].astype(jnp.float32)                 # (TILE_M, C_pad)
        yn = jnp.maximum(yt * scale + shift, 0.0)              # BN2d + ReLU
        # Global average pool: the tile spans `imgs_per_tile` whole images, so
        # pooling is a static per-segment reduction written once per tile.
        inv_hw = 1.0 / float(hw)
        rows = [jnp.sum(yn[i * hw:(i + 1) * hw, :], axis=0, keepdims=True)
                for i in range(imgs_per_tile)]
        pooled_ref[t] = jnp.concatenate(rows, axis=0) * inv_hw

    @pl.when(jnp.logical_and(p == 1, t == last_t))
    def _heads():
        nt, nimg, cp = pooled_ref.shape
        hid = pooled_ref[...].reshape(nt * nimg, cp)           # (B, C_pad) f32
        # Projection head: L x [Linear(D, D, bias) + BatchNorm1d + ReLU].
        x = hid
        for j in range(num_layers):                            # static unroll
            z = jnp.dot(x.astype(jnp.bfloat16), projw_ref[j],
                        preferred_element_type=jnp.float32) + projb_ref[j]
            mu1 = jnp.mean(z, axis=0, keepdims=True)
            var1 = jnp.maximum(
                jnp.mean(z * z, axis=0, keepdims=True) - mu1 * mu1, 0.0)
            z = (z - mu1) * jax.lax.rsqrt(var1 + EPS) * g1_ref[j] + b1_ref[j]
            x = jnp.maximum(z, 0.0)
        proj_out_ref[...] = x
        # Supervised head on hiddens_list[ft_proj_selector=0] (pooled features).
        logits_out_ref[...] = (
            jnp.dot(hid.astype(jnp.bfloat16), supw_ref[...],
                    preferred_element_type=jnp.float32) + supb_ref[...])


# ---------------------------------------------------------------------------
# Parameter packing: padding / transpose / bf16 cast, done ONCE outside jit.
# ---------------------------------------------------------------------------
def pack_params(params):
    cout, cin, kh, kw = params["conv_w"].shape
    nc = params["sup_w"].shape[0]
    k = cin * kh * kw
    c_pad = _round_up(cout, LANE)
    nc_pad = _round_up(nc, LANE)

    # K (= Cin*9) stays UNPADDED: the patches block uses the full last dim and
    # Mosaic pads the matmul vregs internally.  Only the lane (output) dims of
    # weights are padded to 128; padded gamma/beta/weights are zero so padded
    # channels stay exactly 0 through BN/ReLU.
    conv_w = params["conv_w"].reshape(cout, k).T               # (K, Cout)
    conv_w = jnp.pad(conv_w, ((0, 0), (0, c_pad - cout)))
    proj_w = jnp.transpose(params["proj_w"], (0, 2, 1))        # (L, in, out)
    proj_w = jnp.pad(proj_w, ((0, 0), (0, c_pad - cout), (0, c_pad - cout)))
    sup_w = params["sup_w"].T                                  # (Cout, NC)
    sup_w = jnp.pad(sup_w, ((0, c_pad - cout), (0, nc_pad - nc)))

    def pad_row(v, n):
        v = v.reshape(1, -1)
        return jnp.pad(v, ((0, 0), (0, n - v.shape[-1])))

    def pad_lrow(v, n):  # (L, D) -> (L, 1, n)
        return jnp.pad(v, ((0, 0), (0, n - v.shape[-1])))[:, None, :]

    return {
        "conv_w": conv_w.astype(jnp.bfloat16),
        "bn2_gamma": pad_row(params["bn2_gamma"], c_pad),
        "bn2_beta": pad_row(params["bn2_beta"], c_pad),
        "proj_w": proj_w.astype(jnp.bfloat16),
        "proj_b": pad_lrow(params["proj_b"], c_pad),
        "bn1_gamma": pad_lrow(params["bn1_gamma"], c_pad),
        "bn1_beta": pad_lrow(params["bn1_beta"], c_pad),
        "sup_w": sup_w.astype(jnp.bfloat16),
        "sup_b": pad_row(params["sup_b"], nc_pad),
    }


# ---------------------------------------------------------------------------
# Forward wrapper.
# ---------------------------------------------------------------------------
def simclr_forward(x, packed, *, out_dim, num_classes, num_proj_layers):
    B, Cin, H, W = x.shape
    K = Cin * 9
    C_pad = packed["conv_w"].shape[1]
    NC_pad = packed["sup_w"].shape[1]
    L = num_proj_layers
    HW = H * W
    BHW = B * HW

    # Row tile spans whole images (>= 512 rows when possible) so pooling is a
    # per-tile segment reduction with no cross-tile read-modify-write.
    imgs_per_tile = max(1, min(B, MAX_TILE_ROWS // max(HW, 1)))
    while imgs_per_tile > 1 and (B % imgs_per_tile or (imgs_per_tile * HW) % 8):
        imgs_per_tile -= 1
    if (imgs_per_tile * HW) % 8 != 0:
        imgs_per_tile = B                   # full-array tile is always legal
    TILE_M = imgs_per_tile * HW
    num_tiles = B // imgs_per_tile

    # ---- glue: im2col for the 3x3 "same" conv (pad=1, stride=1), bf16 -------
    # TODO(synk): express the conv as 9 shifted in-kernel matmuls on halo'd
    # (TILE_H+2, W+2, Cin) input tiles to remove this im2col HBM stream.
    xp = jnp.pad(x, ((0, 0), (0, 0), (1, 1), (1, 1)))
    cols = [xp[:, :, dy:dy + H, dx:dx + W] for dy in range(3) for dx in range(3)]
    patches = jnp.stack(cols, axis=2)                   # (B, Cin, 9, H, W)
    patches = patches.transpose(0, 3, 4, 1, 2).reshape(BHW, K)
    patches = patches.astype(jnp.bfloat16)              # K left unpadded (36)

    kernel = functools.partial(
        simclr_fused_kernel,
        num_layers=L, n_rows=BHW, hw=HW, imgs_per_tile=imgs_per_tile)

    def const(*idx):  # weights/outputs: fetched once, stay VMEM-resident
        return lambda p, t: idx

    # Pass 1 reads the VMEM y-cache, so pin the patches block to the last tile
    # (the block already resident at the end of pass 0) -> no patch DMA there.
    def patches_map(p, t):
        return (t * (1 - p) + (num_tiles - 1) * p, 0)

    # TODO(synk): for very large BHW the bf16 y-cache (BHW * C_pad * 2 B) can
    # exceed the VMEM budget (esp. v7x 64 MiB) -- spill it to an HBM scratch or
    # fall back to re-streaming patches in pass 1.
    proj_pad, logits_pad = pl.pallas_call(
        kernel,
        out_shape=(
            jax.ShapeDtypeStruct((B, C_pad), jnp.float32),
            jax.ShapeDtypeStruct((B, NC_pad), jnp.float32),
        ),
        grid_spec=pltpu.PrefetchScalarGridSpec(
            num_scalar_prefetch=0,
            grid=(2, num_tiles),
            in_specs=[
                pl.BlockSpec((TILE_M, K), patches_map),              # patches
                pl.BlockSpec((K, C_pad), const(0, 0)),               # conv_w
                pl.BlockSpec((1, C_pad), const(0, 0)),               # bn2 gamma
                pl.BlockSpec((1, C_pad), const(0, 0)),               # bn2 beta
                pl.BlockSpec((L, C_pad, C_pad), const(0, 0, 0)),     # proj_w
                pl.BlockSpec((L, 1, C_pad), const(0, 0, 0)),         # proj_b
                pl.BlockSpec((L, 1, C_pad), const(0, 0, 0)),         # bn1 gamma
                pl.BlockSpec((L, 1, C_pad), const(0, 0, 0)),         # bn1 beta
                pl.BlockSpec((C_pad, NC_pad), const(0, 0)),          # sup_w
                pl.BlockSpec((1, NC_pad), const(0, 0)),              # sup_b
            ],
            out_specs=[
                pl.BlockSpec((B, C_pad), const(0, 0)),               # projection
                pl.BlockSpec((B, NC_pad), const(0, 0)),              # logits
            ],
            scratch_shapes=[
                pltpu.VMEM((1, C_pad), jnp.float32),   # BN2d sum -> scale
                pltpu.VMEM((1, C_pad), jnp.float32),   # BN2d sumsq -> shift
                pltpu.VMEM((num_tiles, imgs_per_tile, C_pad), jnp.float32),
                pltpu.VMEM((num_tiles, TILE_M, C_pad), jnp.bfloat16),  # y cache
            ],
        ),
        compiler_params=pltpu.CompilerParams(
            # Both grid axes accumulate into shared VMEM scratch, so they must
            # stay "arbitrary".
            # TODO(synk): v7x megacore -- split the row-tile axis across both
            # TensorCores with per-core partial stats + a cross-core reduce.
            dimension_semantics=("arbitrary", "arbitrary"),
            vmem_limit_bytes=_vmem_limit_bytes(),
        ),
    )(patches, packed["conv_w"], packed["bn2_gamma"], packed["bn2_beta"],
      packed["proj_w"], packed["proj_b"], packed["bn1_gamma"], packed["bn1_beta"],
      packed["sup_w"], packed["sup_b"])

    projection = proj_pad[:, :out_dim]
    logits = logits_pad[:, :num_classes]
    return projection, logits


def init_params(key, cin, cout, num_proj_layers, num_classes):
    ks = jax.random.split(key, 6)
    return {
        # synthetic encoder stem: 3x3 conv (no bias) + BatchNorm2d
        "conv_w": 0.1 * jax.random.normal(ks[0], (cout, cin, 3, 3), jnp.float32),
        "bn2_gamma": jnp.ones((cout,), jnp.float32),
        "bn2_beta": jnp.zeros((cout,), jnp.float32),
        # projection head: L x [Linear(D, D, bias=True) + BatchNorm1d + ReLU]
        "proj_w": 0.1
        * jax.random.normal(ks[1], (num_proj_layers, cout, cout), jnp.float32),
        "proj_b": 0.01
        * jax.random.normal(ks[2], (num_proj_layers, cout), jnp.float32),
        "bn1_gamma": jnp.ones((num_proj_layers, cout), jnp.float32),
        "bn1_beta": jnp.zeros((num_proj_layers, cout), jnp.float32),
        # supervised head: Linear(D, num_classes, bias=True)
        "sup_w": 0.1 * jax.random.normal(ks[3], (num_classes, cout), jnp.float32),
        "sup_b": 0.01 * jax.random.normal(ks[4], (num_classes,), jnp.float32),
    }


def reference_forward(x, params, *, num_proj_layers):
    """Pure-JAX f32 reference matching the kernel's semantics."""
    B, Cin, H, W = x.shape
    cout = params["conv_w"].shape[0]
    xp = jnp.pad(x, ((0, 0), (0, 0), (1, 1), (1, 1)))
    cols = [xp[:, :, dy:dy + H, dx:dx + W] for dy in range(3) for dx in range(3)]
    patches = jnp.stack(cols, axis=2).transpose(0, 3, 4, 1, 2)
    patches = patches.reshape(B * H * W, Cin * 9)
    y = patches @ params["conv_w"].reshape(cout, -1).T
    mu, var = y.mean(axis=0), y.var(axis=0)
    yn = jax.nn.relu((y - mu) / jnp.sqrt(var + EPS)
                     * params["bn2_gamma"] + params["bn2_beta"])
    hid = yn.reshape(B, H * W, cout).mean(axis=1)
    xh = hid
    for j in range(num_proj_layers):
        z = xh @ params["proj_w"][j].T + params["proj_b"][j]
        m, v = z.mean(axis=0), z.var(axis=0)
        z = (z - m) / jnp.sqrt(v + EPS) * params["bn1_gamma"][j] + params["bn1_beta"][j]
        xh = jax.nn.relu(z)
    logits = hid @ params["sup_w"].T + params["sup_b"]
    return xh, logits


if __name__ == "__main__":
    B, Cin, H, W = 2, 4, 16, 16     # small CIFAR-like input (image_size <= 32)
    Cout = 32                       # synthetic encoder out_dim
    num_proj_layers = 3
    num_classes = 10

    key = jax.random.PRNGKey(0)
    kx, kp = jax.random.split(key)
    x = jax.random.normal(kx, (B, Cin, H, W), jnp.float32)
    params = init_params(kp, Cin, Cout, num_proj_layers, num_classes)

    packed = pack_params(params)    # pad/transpose/bf16-cast once, outside jit

    fwd = jax.jit(functools.partial(
        simclr_forward, out_dim=Cout, num_classes=num_classes,
        num_proj_layers=num_proj_layers))
    projection, logits = fwd(x, packed)
    jax.block_until_ready((projection, logits))

    proj_ref, logits_ref = reference_forward(
        x, params, num_proj_layers=num_proj_layers)

    assert projection.shape == (B, Cout)
    assert logits.shape == (B, num_classes)
    assert bool(jnp.all(jnp.isfinite(projection)))
    assert bool(jnp.all(jnp.isfinite(logits)))
    # Logits path (conv + BN2d + pool + linear) has no batch-of-2 BN1d
    # amplification; check it against the f32 reference with bf16 tolerance.
    assert bool(jnp.allclose(logits, logits_ref, atol=5e-2, rtol=0.0))
    print("KERNEL_OK")
</pallas_src>

<mosaic_0001>
module attributes {stable_mosaic.version = 11 : i64} {
  func.func @simclr_fused_kernel(%arg0: i32, %arg1: i32, %arg2: memref<512x36xbf16, #tpu.memory_space<vmem>>, %arg3: memref<36x128xbf16, #tpu.memory_space<vmem>>, %arg4: memref<1x128xf32, #tpu.memory_space<vmem>>, %arg5: memref<1x128xf32, #tpu.memory_space<vmem>>, %arg6: memref<3x128x128xbf16, #tpu.memory_space<vmem>>, %arg7: memref<3x1x128xf32, #tpu.memory_space<vmem>>, %arg8: memref<3x1x128xf32, #tpu.memory_space<vmem>>, %arg9: memref<3x1x128xf32, #tpu.memory_space<vmem>>, %arg10: memref<128x128xbf16, #tpu.memory_space<vmem>>, %arg11: memref<1x128xf32, #tpu.memory_space<vmem>>, %arg12: memref<2x128xf32, #tpu.memory_space<vmem>>, %arg13: memref<2x128xf32, #tpu.memory_space<vmem>>, %arg14: memref<1x128xf32, #tpu.memory_space<vmem>>, %arg15: memref<1x128xf32, #tpu.memory_space<vmem>>, %arg16: memref<1x2x128xf32, #tpu.memory_space<vmem>>, %arg17: memref<1x512x128xbf16, #tpu.memory_space<vmem>>) attributes {dimension_semantics = [#tpu.dimension_semantics<arbitrary>, #tpu.dimension_semantics<arbitrary>], iteration_bounds = array<i64: 2, 1>, scalar_prefetch = 0 : i64, scratch_operands = 4 : i64, tpu.core_type = #tpu.core_type<tc>, window_params = [{transform_indices = @transform_0, window_bounds = array<i64: 512, 36>}, {pipeline_mode = #tpu.pipeline_mode<synchronous>, transform_indices = @transform_1, window_bounds = array<i64: 36, 128>}, {pipeline_mode = #tpu.pipeline_mode<synchronous>, transform_indices = @transform_2, window_bounds = array<i64: 1, 128>}, {pipeline_mode = #tpu.pipeline_mode<synchronous>, transform_indices = @transform_3, window_bounds = array<i64: 1, 128>}, {pipeline_mode = #tpu.pipeline_mode<synchronous>, transform_indices = @transform_4, window_bounds = array<i64: 3, 128, 128>}, {pipeline_mode = #tpu.pipeline_mode<synchronous>, transform_indices = @transform_5, window_bounds = array<i64: 3, 1, 128>}, {pipeline_mode = #tpu.pipeline_mode<synchronous>, transform_indices = @transform_6, window_bounds = array<i64: 3, 1, 128>}, {pipeline_mode = #tpu.pipeline_mode<synchronous>, transform_indices = @transform_7, window_bounds = array<i64: 3, 1, 128>}, {pipeline_mode = #tpu.pipeline_mode<synchronous>, transform_indices = @transform_8, window_bounds = array<i64: 128, 128>}, {pipeline_mode = #tpu.pipeline_mode<synchronous>, transform_indices = @transform_9, window_bounds = array<i64: 1, 128>}, {pipeline_mode = #tpu.pipeline_mode<synchronous>, transform_indices = @transform_10, window_bounds = array<i64: 2, 128>}, {pipeline_mode = #tpu.pipeline_mode<synchronous>, transform_indices = @transform_11, window_bounds = array<i64: 2, 128>}]} {
    %c0_i32 = arith.constant 0 : i32
    %0 = arith.cmpi eq, %arg0, %c0_i32 : i32
    %c0_i32_0 = arith.constant 0 : i32
    %1 = arith.cmpi eq, %arg1, %c0_i32_0 : i32
    %2 = arith.andi %0, %1 : i1
    %3 = arith.extui %2 : i1 to i32
    %c0_i32_1 = arith.constant 0 : i32
    %4 = arith.cmpi ne, %3, %c0_i32_1 : i32
    scf.if %4 {
      %cst = arith.constant 0.000000e+00 : f32
      %21 = vector.broadcast %cst : f32 to vector<1x128xf32>
      %c0 = arith.constant 0 : index
      %c0_11 = arith.constant 0 : index
      %22 = vector.load %arg14[%c0, %c0_11] : memref<1x128xf32, #tpu.memory_space<vmem>>, vector<1x128xf32>
      tpu.vector_store %arg14[%c0, %c0_11], %21 {strides = array<i32>} : memref<1x128xf32, #tpu.memory_space<vmem>>, vector<1x128xf32>,
      %cst_12 = arith.constant 0.000000e+00 : f32
      %23 = vector.broadcast %cst_12 : f32 to vector<1x128xf32>
      %c0_13 = arith.constant 0 : index
      %c0_14 = arith.constant 0 : index
      %24 = vector.load %arg15[%c0_13, %c0_14] : memref<1x128xf32, #tpu.memory_space<vmem>>, vector<1x128xf32>
      tpu.vector_store %arg15[%c0_13, %c0_14], %23 {strides = array<i32>} : memref<1x128xf32, #tpu.memory_space<vmem>>, vector<1x128xf32>,
      %cst_15 = arith.constant 0.000000e+00 : f32
      %25 = vector.broadcast %cst_15 : f32 to vector<1x2x128xf32>
      %c0_16 = arith.constant 0 : index
      %c0_17 = arith.constant 0 : index
      %c0_18 = arith.constant 0 : index
      %26 = vector.load %arg16[%c0_16, %c0_17, %c0_18] : memref<1x2x128xf32, #tpu.memory_space<vmem>>, vector<1x2x128xf32>
      tpu.vector_store %arg16[%c0_16, %c0_17, %c0_18], %25 {strides = array<i32>} : memref<1x2x128xf32, #tpu.memory_space<vmem>>, vector<1x2x128xf32>,
    } else {
    }
    %c0_i32_2 = arith.constant 0 : i32
    %5 = arith.cmpi eq, %arg0, %c0_i32_2 : i32
    %6 = arith.extui %5 : i1 to i32
    %c0_i32_3 = arith.constant 0 : i32
    %7 = arith.cmpi ne, %6, %c0_i32_3 : i32
    scf.if %7 {
      %c0 = arith.constant 0 : index
      %c0_11 = arith.constant 0 : index
      %21 = vector.load %arg2[%c0, %c0_11] : memref<512x36xbf16, #tpu.memory_space<vmem>>, vector<512x36xbf16>
      %c0_12 = arith.constant 0 : index
      %c0_13 = arith.constant 0 : index
      %22 = vector.load %arg3[%c0_12, %c0_13] : memref<36x128xbf16, #tpu.memory_space<vmem>>, vector<36x128xbf16>
      %cst = arith.constant dense<0.000000e+00> : vector<512x128xf32>
      %23 = tpu.matmul %21, %22, %cst {dimension_numbers = #tpu.dot_dimension_numbers<[1], [0], [0], [1], [0, 0, 1, 1], [], []>} : vector<512x36xbf16>, vector<36x128xbf16>, vector<512x128xf32> -> vector<512x128xf32>
      %c0_14 = arith.constant 0 : index
      %c0_15 = arith.constant 0 : index
      %24 = vector.load %arg14[%c0_14, %c0_15] : memref<1x128xf32, #tpu.memory_space<vmem>>, vector<1x128xf32>
      %cst_16 = arith.constant dense<0.000000e+00> : vector<128xf32>
      %25 = vector.multi_reduction <add>, %23, %cst_16 [0] : vector<512x128xf32> to vector<128xf32>
      %26 = vector.shape_cast %25 : vector<128xf32> to vector<1x128xf32>
      %27 = arith.addf %24, %26 : vector<1x128xf32>
      %c0_17 = arith.constant 0 : index
      %c0_18 = arith.constant 0 : index
      %28 = vector.load %arg14[%c0_17, %c0_18] : memref<1x128xf32, #tpu.memory_space<vmem>>, vector<1x128xf32>
      tpu.vector_store %arg14[%c0_17, %c0_18], %27 {strides = array<i32>} : memref<1x128xf32, #tpu.memory_space<vmem>>, vector<1x128xf32>,
      %c0_19 = arith.constant 0 : index
      %c0_20 = arith.constant 0 : index
      %29 = vector.load %arg15[%c0_19, %c0_20] : memref<1x128xf32, #tpu.memory_space<vmem>>, vector<1x128xf32>
      %30 = arith.mulf %23, %23 : vector<512x128xf32>
      %cst_21 = arith.constant dense<0.000000e+00> : vector<128xf32>
      %31 = vector.multi_reduction <add>, %30, %cst_21 [0] : vector<512x128xf32> to vector<128xf32>
      %32 = vector.shape_cast %31 : vector<128xf32> to vector<1x128xf32>
      %33 = arith.addf %29, %32 : vector<1x128xf32>
      %c0_22 = arith.constant 0 : index
      %c0_23 = arith.constant 0 : index
      %34 = vector.load %arg15[%c0_22, %c0_23] : memref<1x128xf32, #tpu.memory_space<vmem>>, vector<1x128xf32>
      tpu.vector_store %arg15[%c0_22, %c0_23], %33 {strides = array<i32>} : memref<1x128xf32, #tpu.memory_space<vmem>>, vector<1x128xf32>,
      %35 = arith.truncf %23 : vector<512x128xf32> to vector<512x128xbf16>
      %36 = arith.index_cast %arg1 : i32 to index
      %c0_24 = arith.constant 0 : index
      %c0_25 = arith.constant 0 : index
      %37 = vector.load %arg17[%36, %c0_24, %c0_25] : memref<1x512x128xbf16, #tpu.memory_space<vmem>>, vector<1x512x128xbf16>
      %38 = vector.shape_cast %37 : vector<1x512x128xbf16> to vector<512x128xbf16>
      %39 = vector.shape_cast %35 : vector<512x128xbf16> to vector<1x512x128xbf16>
      tpu.vector_store %arg17[%36, %c0_24, %c0_25], %39 {strides = array<i32>} : memref<1x512x128xbf16, #tpu.memory_space<vmem>>, vector<1x512x128xbf16>,
    } else {
    }
    %c1_i32 = arith.constant 1 : i32
    %8 = arith.cmpi eq, %arg0, %c1_i32 : i32
    %c0_i32_4 = arith.constant 0 : i32
    %9 = arith.cmpi eq, %arg1, %c0_i32_4 : i32
    %10 = arith.andi %8, %9 : i1
    %11 = arith.extui %10 : i1 to i32
    %c0_i32_5 = arith.constant 0 : i32
    %12 = arith.cmpi ne, %11, %c0_i32_5 : i32
    scf.if %12 {
      %c0 = arith.constant 0 : index
      %c0_11 = arith.constant 0 : index
      %21 = vector.load %arg14[%c0, %c0_11] : memref<1x128xf32, #tpu.memory_space<vmem>>, vector<1x128xf32>
      %cst = arith.constant 0.001953125 : f32
      %22 = vector.broadcast %cst : f32 to vector<1x128xf32>
      %23 = arith.mulf %21, %22 : vector<1x128xf32>
      %c0_12 = arith.constant 0 : index
      %c0_13 = arith.constant 0 : index
      %24 = vector.load %arg15[%c0_12, %c0_13] : memref<1x128xf32, #tpu.memory_space<vmem>>, vector<1x128xf32>
      %cst_14 = arith.constant 0.001953125 : f32
      %25 = vector.broadcast %cst_14 : f32 to vector<1x128xf32>
      %26 = arith.mulf %24, %25 : vector<1x128xf32>
      %27 = arith.mulf %23, %23 : vector<1x128xf32>
      %28 = arith.subf %26, %27 : vector<1x128xf32>
      %cst_15 = arith.constant 0.000000e+00 : f32
      %29 = vector.broadcast %cst_15 : f32 to vector<1x128xf32>
      %30 = arith.maximumf %28, %29 : vector<1x128xf32>
      %c0_16 = arith.constant 0 : index
      %c0_17 = arith.constant 0 : index
      %31 = vector.load %arg4[%c0_16, %c0_17] : memref<1x128xf32, #tpu.memory_space<vmem>>, vector<1x128xf32>
      %cst_18 = arith.constant 9.99999974E-6 : f32
      %32 = vector.broadcast %cst_18 : f32 to vector<1x128xf32>
      %33 = arith.addf %30, %32 : vector<1x128xf32>
      %34 = math.rsqrt %33 : vector<1x128xf32>
      %35 = arith.mulf %31, %34 : vector<1x128xf32>
      %c0_19 = arith.constant 0 : index
      %c0_20 = arith.constant 0 : index
      %36 = vector.load %arg14[%c0_19, %c0_20] : memref<1x128xf32, #tpu.memory_space<vmem>>, vector<1x128xf32>
      tpu.vector_store %arg14[%c0_19, %c0_20], %35 {strides = array<i32>} : memref<1x128xf32, #tpu.memory_space<vmem>>, vector<1x128xf32>,
      %c0_21 = arith.constant 0 : index
      %c0_22 = arith.constant 0 : index
      %37 = vector.load %arg5[%c0_21, %c0_22] : memref<1x128xf32, #tpu.memory_space<vmem>>, vector<1x128xf32>
      %38 = arith.mulf %23, %35 : vector<1x128xf32>
      %39 = arith.subf %37, %38 : vector<1x128xf32>
      %c0_23 = arith.constant 0 : index
      %c0_24 = arith.constant 0 : index
      %40 = vector.load %arg15[%c0_23, %c0_24] : memref<1x128xf32, #tpu.memory_space<vmem>>, vector<1x128xf32>
      tpu.vector_store %arg15[%c0_23, %c0_24], %39 {strides = array<i32>} : memref<1x128xf32, #tpu.memory_space<vmem>>, vector<1x128xf32>,
    } else {
    }
    %c1_i32_6 = arith.constant 1 : i32
    %13 = arith.cmpi eq, %arg0, %c1_i32_6 : i32
    %14 = arith.extui %13 : i1 to i32
    %c0_i32_7 = arith.constant 0 : i32
    %15 = arith.cmpi ne, %14, %c0_i32_7 : i32
    scf.if %15 {
      %c0 = arith.constant 0 : index
      %c0_11 = arith.constant 0 : index
      %21 = vector.load %arg14[%c0, %c0_11] : memref<1x128xf32, #tpu.memory_space<vmem>>, vector<1x128xf32>
      %c0_12 = arith.constant 0 : index
      %c0_13 = arith.constant 0 : index
      %22 = vector.load %arg15[%c0_12, %c0_13] : memref<1x128xf32, #tpu.memory_space<vmem>>, vector<1x128xf32>
      %23 = arith.index_cast %arg1 : i32 to index
      %c0_14 = arith.constant 0 : index
      %c0_15 = arith.constant 0 : index
      %24 = vector.load %arg17[%23, %c0_14, %c0_15] : memref<1x512x128xbf16, #tpu.memory_space<vmem>>, vector<1x512x128xbf16>
      %25 = vector.shape_cast %24 : vector<1x512x128xbf16> to vector<512x128xbf16>
      %26 = arith.extf %25 : vector<512x128xbf16> to vector<512x128xf32>
      %27 = vector.broadcast %21 : vector<1x128xf32> to vector<512x128xf32>
      %28 = arith.mulf %26, %27 : vector<512x128xf32>
      %29 = vector.broadcast %22 : vector<1x128xf32> to vector<512x128xf32>
      %30 = arith.addf %28, %29 : vector<512x128xf32>
      %cst = arith.constant 0.000000e+00 : f32
      %31 = vector.broadcast %cst : f32 to vector<512x128xf32>
      %32 = arith.maximumf %30, %31 : vector<512x128xf32>
      %33 = vector.extract_strided_slice %32 {offsets = [0, 0], sizes = [256, 128], strides = [1, 1]} : vector<512x128xf32> to vector<256x128xf32>
      %cst_16 = arith.constant dense<0.000000e+00> : vector<128xf32>
      %34 = vector.multi_reduction <add>, %33, %cst_16 [0] : vector<256x128xf32> to vector<128xf32>
      %35 = vector.shape_cast %34 : vector<128xf32> to vector<1x128xf32>
      %36 = vector.extract_strided_slice %32 {offsets = [256, 0], sizes = [256, 128], strides = [1, 1]} : vector<512x128xf32> to vector<256x128xf32>
      %cst_17 = arith.constant dense<0.000000e+00> : vector<128xf32>
      %37 = vector.multi_reduction <add>, %36, %cst_17 [0] : vector<256x128xf32> to vector<128xf32>
      %38 = vector.shape_cast %37 : vector<128xf32> to vector<1x128xf32>
      %39 = tpu.concatenate %35, %38 in 0 : vector<1x128xf32>, vector<1x128xf32> -> vector<2x128xf32>
      %cst_18 = arith.constant 3.906250e-03 : f32
      %40 = vector.broadcast %cst_18 : f32 to vector<2x128xf32>
      %41 = arith.mulf %39, %40 : vector<2x128xf32>
      %42 = arith.index_cast %arg1 : i32 to index
      %c0_19 = arith.constant 0 : index
      %c0_20 = arith.constant 0 : index
      %43 = vector.load %arg16[%42, %c0_19, %c0_20] : memref<1x2x128xf32, #tpu.memory_space<vmem>>, vector<1x2x128xf32>
      %44 = vector.shape_cast %43 : vector<1x2x128xf32> to vector<2x128xf32>
      %45 = vector.shape_cast %41 : vector<2x128xf32> to vector<1x2x128xf32>
      tpu.vector_store %arg16[%42, %c0_19, %c0_20], %45 {strides = array<i32>} : memref<1x2x128xf32, #tpu.memory_space<vmem>>, vector<1x2x128xf32>,
    } else {
    }
    %c1_i32_8 = arith.constant 1 : i32
    %16 = arith.cmpi eq, %arg0, %c1_i32_8 : i32
    %c0_i32_9 = arith.constant 0 : i32
    %17 = arith.cmpi eq, %arg1, %c0_i32_9 : i32
    %18 = arith.andi %16, %17 : i1
    %19 = arith.extui %18 : i1 to i32
    %c0_i32_10 = arith.constant 0 : i32
    %20 = arith.cmpi ne, %19, %c0_i32_10 : i32
    scf.if %20 {
      %c0 = arith.constant 0 : index
      %c0_11 = arith.constant 0 : index
      %c0_12 = arith.constant 0 : index
      %21 = vector.load %arg16[%c0, %c0_11, %c0_12] : memref<1x2x128xf32, #tpu.memory_space<vmem>>, vector<1x2x128xf32>
      %22 = vector.shape_cast %21 : vector<1x2x128xf32> to vector<2x128xf32>
      %23 = arith.truncf %22 : vector<2x128xf32> to vector<2x128xbf16>
      %c0_13 = arith.constant 0 : index
      %c0_14 = arith.constant 0 : index
      %c0_15 = arith.constant 0 : index
      %24 = vector.load %arg6[%c0_13, %c0_14, %c0_15] : memref<3x128x128xbf16, #tpu.memory_space<vmem>>, vector<1x128x128xbf16>
      %25 = vector.shape_cast %24 : vector<1x128x128xbf16> to vector<128x128xbf16>
      %cst = arith.constant dense<0.000000e+00> : vector<2x128xf32>
      %26 = tpu.matmul %23, %25, %cst {dimension_numbers = #tpu.dot_dimension_numbers<[1], [0], [0], [1], [0, 0, 1, 1], [], []>} : vector<2x128xbf16>, vector<128x128xbf16>, vector<2x128xf32> -> vector<2x128xf32>
      %c0_16 = arith.constant 0 : index
      %c0_17 = arith.constant 0 : index
      %c0_18 = arith.constant 0 : index
      %27 = vector.load %arg7[%c0_16, %c0_17, %c0_18] : memref<3x1x128xf32, #tpu.memory_space<vmem>>, vector<1x1x128xf32>
      %28 = vector.shape_cast %27 : vector<1x1x128xf32> to vector<1x128xf32>
      %29 = vector.broadcast %28 : vector<1x128xf32> to vector<2x128xf32>
      %30 = arith.addf %26, %29 : vector<2x128xf32>
      %cst_19 = arith.constant dense<0.000000e+00> : vector<128xf32>
      %31 = vector.multi_reduction <add>, %30, %cst_19 [0] : vector<2x128xf32> to vector<128xf32>
      %32 = vector.shape_cast %31 : vector<128xf32> to vector<1x128xf32>
      %cst_20 = arith.constant 2.000000e+00 : f32
      %33 = vector.broadcast %cst_20 : f32 to vector<1x128xf32>
      %34 = arith.divf %32, %33 : vector<1x128xf32>
      %35 = arith.mulf %30, %30 : vector<2x128xf32>
      %cst_21 = arith.constant dense<0.000000e+00> : vector<128xf32>
      %36 = vector.multi_reduction <add>, %35, %cst_21 [0] : vector<2x128xf32> to vector<128xf32>
      %37 = vector.shape_cast %36 : vector<128xf32> to vector<1x128xf32>
      %cst_22 = arith.constant 2.000000e+00 : f32
      %38 = vector.broadcast %cst_22 : f32 to vector<1x128xf32>
      %39 = arith.divf %37, %38 : vector<1x128xf32>
      %40 = arith.mulf %34, %34 : vector<1x128xf32>
      %41 = arith.subf %39, %40 : vector<1x128xf32>
      %cst_23 = arith.constant 0.000000e+00 : f32
      %42 = vector.broadcast %cst_23 : f32 to vector<1x128xf32>
      %43 = arith.maximumf %41, %42 : vector<1x128xf32>
      %44 = vector.broadcast %34 : vector<1x128xf32> to vector<2x128xf32>
      %45 = arith.subf %30, %44 : vector<2x128xf32>
      %cst_24 = arith.constant 9.99999974E-6 : f32
      %46 = vector.broadcast %cst_24 : f32 to vector<1x128xf32>
      %47 = arith.addf %43, %46 : vector<1x128xf32>
      %48 = math.rsqrt %47 : vector<1x128xf32>
      %49 = vector.broadcast %48 : vector<1x128xf32> to vector<2x128xf32>
      %50 = arith.mulf %45, %49 : vector<2x128xf32>
      %c0_25 = arith.constant 0 : index
      %c0_26 = arith.constant 0 : index
      %c0_27 = arith.constant 0 : index
      %51 = vector.load %arg8[%c0_25, %c0_26, %c0_27] : memref<3x1x128xf32, #tpu.memory_space<vmem>>, vector<1x1x128xf32>
      %52 = vector.shape_cast %51 : vector<1x1x128xf32> to vector<1x128xf32>
      %53 = vector.broadcast %52 : vector<1x128xf32> to vector<2x128xf32>
      %54 = arith.mulf %50, %53 : vector<2x128xf32>
      %c0_28 = arith.constant 0 : index
      %c0_29 = arith.constant 0 : index
      %c0_30 = arith.constant 0 : index
      %55 = vector.load %arg9[%c0_28, %c0_29, %c0_30] : memref<3x1x128xf32, #tpu.memory_space<vmem>>, vector<1x1x128xf32>
      %56 = vector.shape_cast %55 : vector<1x1x128xf32> to vector<1x128xf32>
      %57 = vector.broadcast %56 : vector<1x128xf32> to vector<2x128xf32>
      %58 = arith.addf %54, %57 : vector<2x128xf32>
      %cst_31 = arith.constant 0.000000e+00 : f32
      %59 = vector.broadcast %cst_31 : f32 to vector<2x128xf32>
      %60 = arith.maximumf %58, %59 : vector<2x128xf32>
      %61 = arith.truncf %60 : vector<2x128xf32> to vector<2x128xbf16>
      %c1 = arith.constant 1 : index
      %c0_32 = arith.constant 0 : index
      %c0_33 = arith.constant 0 : index
      %62 = vector.load %arg6[%c1, %c0_32, %c0_33] : memref<3x128x128xbf16, #tpu.memory_space<vmem>>, vector<1x128x128xbf16>
      %63 = vector.shape_cast %62 : vector<1x128x128xbf16> to vector<128x128xbf16>
      %cst_34 = arith.constant dense<0.000000e+00> : vector<2x128xf32>
      %64 = tpu.matmul %61, %63, %cst_34 {dimension_numbers = #tpu.dot_dimension_numbers<[1], [0], [0], [1], [0, 0, 1, 1], [], []>} : vector<2x128xbf16>, vector<128x128xbf16>, vector<2x128xf32> -> vector<2x128xf32>
      %c1_35 = arith.constant 1 : index
      %c0_36 = arith.constant 0 : index
      %c0_37 = arith.constant 0 : index
      %65 = vector.load %arg7[%c1_35, %c0_36, %c0_37] : memref<3x1x128xf32, #tpu.memory_space<vmem>>, vector<1x1x128xf32>
      %66 = vector.shape_cast %65 : vector<1x1x128xf32> to vector<1x128xf32>
      %67 = vector.broadcast %66 : vector<1x128xf32> to vector<2x128xf32>
      %68 = arith.addf %64, %67 : vector<2x128xf32>
      %cst_38 = arith.constant dense<0.000000e+00> : vector<128xf32>
      %69 = vector.multi_reduction <add>, %68, %cst_38 [0] : vector<2x128xf32> to vector<128xf32>
      %70 = vector.shape_cast %69 : vector<128xf32> to vector<1x128xf32>
      %cst_39 = arith.constant 2.000000e+00 : f32
      %71 = vector.broadcast %cst_39 : f32 to vector<1x128xf32>
      %72 = arith.divf %70, %71 : vector<1x128xf32>
      %73 = arith.mulf %68, %68 : vector<2x128xf32>
      %cst_40 = arith.constant dense<0.000000e+00> : vector<128xf32>
      %74 = vector.multi_reduction <add>, %73, %cst_40 [0] : vector<2x128xf32> to vector<128xf32>
      %75 = vector.shape_cast %74 : vector<128xf32> to vector<1x128xf32>
      %cst_41 = arith.constant 2.000000e+00 : f32
      %76 = vector.broadcast %cst_41 : f32 to vector<1x128xf32>
      %77 = arith.divf %75, %76 : vector<1x128xf32>
      %78 = arith.mulf %72, %72 : vector<1x128xf32>
      %79 = arith.subf %77, %78 : vector<1x128xf32>
      %cst_42 = arith.constant 0.000000e+00 : f32
      %80 = vector.broadcast %cst_42 : f32 to vector<1x128xf32>
      %81 = arith.maximumf %79, %80 : vector<1x128xf32>
      %82 = vector.broadcast %72 : vector<1x128xf32> to vector<2x128xf32>
      %83 = arith.subf %68, %82 : vector<2x128xf32>
      %cst_43 = arith.constant 9.99999974E-6 : f32
      %84 = vector.broadcast %cst_43 : f32 to vector<1x128xf32>
      %85 = arith.addf %81, %84 : vector<1x128xf32>
      %86 = math.rsqrt %85 : vector<1x128xf32>
      %87 = vector.broadcast %86 : vector<1x128xf32> to vector<2x128xf32>
      %88 = arith.mulf %83, %87 : vector<2x128xf32>
      %c1_44 = arith.constant 1 : index
      %c0_45 = arith.constant 0 : index
      %c0_46 = arith.constant 0 : index
      %89 = vector.load %arg8[%c1_44, %c0_45, %c0_46] : memref<3x1x128xf32, #tpu.memory_space<vmem>>, vector<1x1x128xf32>
      %90 = vector.shape_cast %89 : vector<1x1x128xf32> to vector<1x128xf32>
      %91 = vector.broadcast %90 : vector<1x128xf32> to vector<2x128xf32>
      %92 = arith.mulf %88, %91 : vector<2x128xf32>
      %c1_47 = arith.constant 1 : index
      %c0_48 = arith.constant 0 : index
      %c0_49 = arith.constant 0 : index
      %93 = vector.load %arg9[%c1_47, %c0_48, %c0_49] : memref<3x1x128xf32, #tpu.memory_space<vmem>>, vector<1x1x128xf32>
      %94 = vector.shape_cast %93 : vector<1x1x128xf32> to vector<1x128xf32>
      %95 = vector.broadcast %94 : vector<1x128xf32> to vector<2x128xf32>
      %96 = arith.addf %92, %95 : vector<2x128xf32>
      %cst_50 = arith.constant 0.000000e+00 : f32
      %97 = vector.broadcast %cst_50 : f32 to vector<2x128xf32>
      %98 = arith.maximumf %96, %97 : vector<2x128xf32>
      %99 = arith.truncf %98 : vector<2x128xf32> to vector<2x128xbf16>
      %c2 = arith.constant 2 : index
      %c0_51 = arith.constant 0 : index
      %c0_52 = arith.constant 0 : index
      %100 = vector.load %arg6[%c2, %c0_51, %c0_52] : memref<3x128x128xbf16, #tpu.memory_space<vmem>>, vector<1x128x128xbf16>
      %101 = vector.shape_cast %100 : vector<1x128x128xbf16> to vector<128x128xbf16>
      %cst_53 = arith.constant dense<0.000000e+00> : vector<2x128xf32>
      %102 = tpu.matmul %99, %101, %cst_53 {dimension_numbers = #tpu.dot_dimension_numbers<[1], [0], [0], [1], [0, 0, 1, 1], [], []>} : vector<2x128xbf16>, vector<128x128xbf16>, vector<2x128xf32> -> vector<2x128xf32>
      %c2_54 = arith.constant 2 : index
      %c0_55 = arith.constant 0 : index
      %c0_56 = arith.constant 0 : index
      %103 = vector.load %arg7[%c2_54, %c0_55, %c0_56] : memref<3x1x128xf32, #tpu.memory_space<vmem>>, vector<1x1x128xf32>
      %104 = vector.shape_cast %103 : vector<1x1x128xf32> to vector<1x128xf32>
      %105 = vector.broadcast %104 : vector<1x128xf32> to vector<2x128xf32>
      %106 = arith.addf %102, %105 : vector<2x128xf32>
      %cst_57 = arith.constant dense<0.000000e+00> : vector<128xf32>
      %107 = vector.multi_reduction <add>, %106, %cst_57 [0] : vector<2x128xf32> to vector<128xf32>
      %108 = vector.shape_cast %107 : vector<128xf32> to vector<1x128xf32>
      %cst_58 = arith.constant 2.000000e+00 : f32
      %109 = vector.broadcast %cst_58 : f32 to vector<1x128xf32>
      %110 = arith.divf %108, %109 : vector<1x128xf32>
      %111 = arith.mulf %106, %106 : vector<2x128xf32>
      %cst_59 = arith.constant dense<0.000000e+00> : vector<128xf32>
      %112 = vector.multi_reduction <add>, %111, %cst_59 [0] : vector<2x128xf32> to vector<128xf32>
      %113 = vector.shape_cast %112 : vector<128xf32> to vector<1x128xf32>
      %cst_60 = arith.constant 2.000000e+00 : f32
      %114 = vector.broadcast %cst_60 : f32 to vector<1x128xf32>
      %115 = arith.divf %113, %114 : vector<1x128xf32>
      %116 = arith.mulf %110, %110 : vector<1x128xf32>
      %117 = arith.subf %115, %116 : vector<1x128xf32>
      %cst_61 = arith.constant 0.000000e+00 : f32
      %118 = vector.broadcast %cst_61 : f32 to vector<1x128xf32>
      %119 = arith.maximumf %117, %118 : vector<1x128xf32>
      %120 = vector.broadcast %110 : vector<1x128xf32> to vector<2x128xf32>
      %121 = arith.subf %106, %120 : vector<2x128xf32>
      %cst_62 = arith.constant 9.99999974E-6 : f32
      %122 = vector.broadcast %cst_62 : f32 to vector<1x128xf32>
      %123 = arith.addf %119, %122 : vector<1x128xf32>
      %124 = math.rsqrt %123 : vector<1x128xf32>
      %125 = vector.broadcast %124 : vector<1x128xf32> to vector<2x128xf32>
      %126 = arith.mulf %121, %125 : vector<2x128xf32>
      %c2_63 = arith.constant 2 : index
      %c0_64 = arith.constant 0 : index
      %c0_65 = arith.constant 0 : index
      %127 = vector.load %arg8[%c2_63, %c0_64, %c0_65] : memref<3x1x128xf32, #tpu.memory_space<vmem>>, vector<1x1x128xf32>
      %128 = vector.shape_cast %127 : vector<1x1x128xf32> to vector<1x128xf32>
      %129 = vector.broadcast %128 : vector<1x128xf32> to vector<2x128xf32>
      %130 = arith.mulf %126, %129 : vector<2x128xf32>
      %c2_66 = arith.constant 2 : index
      %c0_67 = arith.constant 0 : index
      %c0_68 = arith.constant 0 : index
      %131 = vector.load %arg9[%c2_66, %c0_67, %c0_68] : memref<3x1x128xf32, #tpu.memory_space<vmem>>, vector<1x1x128xf32>
      %132 = vector.shape_cast %131 : vector<1x1x128xf32> to vector<1x128xf32>
      %133 = vector.broadcast %132 : vector<1x128xf32> to vector<2x128xf32>
      %134 = arith.addf %130, %133 : vector<2x128xf32>
      %cst_69 = arith.constant 0.000000e+00 : f32
      %135 = vector.broadcast %cst_69 : f32 to vector<2x128xf32>
      %136 = arith.maximumf %134, %135 : vector<2x128xf32>
      %c0_70 = arith.constant 0 : index
      %c0_71 = arith.constant 0 : index
      %137 = vector.load %arg12[%c0_70, %c0_71] : memref<2x128xf32, #tpu.memory_space<vmem>>, vector<2x128xf32>
      tpu.vector_store %arg12[%c0_70, %c0_71], %136 {strides = array<i32>} : memref<2x128xf32, #tpu.memory_space<vmem>>, vector<2x128xf32>,
      %138 = arith.truncf %22 : vector<2x128xf32> to vector<2x128xbf16>
      %c0_72 = arith.constant 0 : index
      %c0_73 = arith.constant 0 : index
      %139 = vector.load %arg10[%c0_72, %c0_73] : memref<128x128xbf16, #tpu.memory_space<vmem>>, vector<128x128xbf16>
      %cst_74 = arith.constant dense<0.000000e+00> : vector<2x128xf32>
      %140 = tpu.matmul %138, %139, %cst_74 {dimension_numbers = #tpu.dot_dimension_numbers<[1], [0], [0], [1], [0, 0, 1, 1], [], []>} : vector<2x128xbf16>, vector<128x128xbf16>, vector<2x128xf32> -> vector<2x128xf32>
      %c0_75 = arith.constant 0 : index
      %c0_76 = arith.constant 0 : index
      %141 = vector.load %arg11[%c0_75, %c0_76] : memref<1x128xf32, #tpu.memory_space<vmem>>, vector<1x128xf32>
      %142 = vector.broadcast %141 : vector<1x128xf32> to vector<2x128xf32>
      %143 = arith.addf %140, %142 : vector<2x128xf32>
      %c0_77 = arith.constant 0 : index
      %c0_78 = arith.constant 0 : index
      %144 = vector.load %arg13[%c0_77, %c0_78] : memref<2x128xf32, #tpu.memory_space<vmem>>, vector<2x128xf32>
      tpu.vector_store %arg13[%c0_77, %c0_78], %143 {strides = array<i32>} : memref<2x128xf32, #tpu.memory_space<vmem>>, vector<2x128xf32>,
    } else {
    }
    return
  }
  func.func @transform_0(%arg0: i32, %arg1: i32) -> (i32, i32) {
    %c1_i32 = arith.constant 1 : i32
    %0 = arith.subi %c1_i32, %arg0 : i32
    %1 = arith.muli %arg1, %0 : i32
    %c0_i32 = arith.constant 0 : i32
    %2 = arith.muli %c0_i32, %arg0 : i32
    %3 = arith.addi %1, %2 : i32
    %c0_i32_0 = arith.constant 0 : i32
    %c0_i32_1 = arith.constant 0 : i32
    return %3, %c0_i32_0 : i32, i32
  }
  func.func @transform_1(%arg0: i32, %arg1: i32) -> (i32, i32) {
    %c0_i32 = arith.constant 0 : i32
    %c0_i32_0 = arith.constant 0 : i32
    %c0_i32_1 = arith.constant 0 : i32
    return %c0_i32, %c0_i32_0 : i32, i32
  }
  func.func @transform_2(%arg0: i32, %arg1: i32) -> (i32, i32) {
    %c0_i32 = arith.constant 0 : i32
    %c0_i32_0 = arith.constant 0 : i32
    %c0_i32_1 = arith.constant 0 : i32
    return %c0_i32, %c0_i32_0 : i32, i32
  }
  func.func @transform_3(%arg0: i32, %arg1: i32) -> (i32, i32) {
    %c0_i32 = arith.constant 0 : i32
    %c0_i32_0 = arith.constant 0 : i32
    %c0_i32_1 = arith.constant 0 : i32
    return %c0_i32, %c0_i32_0 : i32, i32
  }
  func.func @transform_4(%arg0: i32, %arg1: i32) -> (i32, i32, i32) {
    %c0_i32 = arith.constant 0 : i32
    %c0_i32_0 = arith.constant 0 : i32
    %c0_i32_1 = arith.constant 0 : i32
    %c0_i32_2 = arith.constant 0 : i32
    return %c0_i32, %c0_i32_0, %c0_i32_1 : i32, i32, i32
  }
  func.func @transform_5(%arg0: i32, %arg1: i32) -> (i32, i32, i32) {
    %c0_i32 = arith.constant 0 : i32
    %c0_i32_0 = arith.constant 0 : i32
    %c0_i32_1 = arith.constant 0 : i32
    %c0_i32_2 = arith.constant 0 : i32
    return %c0_i32, %c0_i32_0, %c0_i32_1 : i32, i32, i32
  }
  func.func @transform_6(%arg0: i32, %arg1: i32) -> (i32, i32, i32) {
    %c0_i32 = arith.constant 0 : i32
    %c0_i32_0 = arith.constant 0 : i32
    %c0_i32_1 = arith.constant 0 : i32
    %c0_i32_2 = arith.constant 0 : i32
    return %c0_i32, %c0_i32_0, %c0_i32_1 : i32, i32, i32
  }
  func.func @transform_7(%arg0: i32, %arg1: i32) -> (i32, i32, i32) {
    %c0_i32 = arith.constant 0 : i32
    %c0_i32_0 = arith.constant 0 : i32
    %c0_i32_1 = arith.constant 0 : i32
    %c0_i32_2 = arith.constant 0 : i32
    return %c0_i32, %c0_i32_0, %c0_i32_1 : i32, i32, i32
  }
  func.func @transform_8(%arg0: i32, %arg1: i32) -> (i32, i32) {
    %c0_i32 = arith.constant 0 : i32
    %c0_i32_0 = arith.constant 0 : i32
    %c0_i32_1 = arith.constant 0 : i32
    return %c0_i32, %c0_i32_0 : i32, i32
  }
  func.func @transform_9(%arg0: i32, %arg1: i32) -> (i32, i32) {
    %c0_i32 = arith.constant 0 : i32
    %c0_i32_0 = arith.constant 0 : i32
    %c0_i32_1 = arith.constant 0 : i32
    return %c0_i32, %c0_i32_0 : i32, i32
  }
  func.func @transform_10(%arg0: i32, %arg1: i32) -> (i32, i32) {
    %c0_i32 = arith.constant 0 : i32
    %c0_i32_0 = arith.constant 0 : i32
    %c0_i32_1 = arith.constant 0 : i32
    return %c0_i32, %c0_i32_0 : i32, i32
  }
  func.func @transform_11(%arg0: i32, %arg1: i32) -> (i32, i32) {
    %c0_i32 = arith.constant 0 : i32
    %c0_i32_0 = arith.constant 0 : i32
    %c0_i32_1 = arith.constant 0 : i32
    return %c0_i32, %c0_i32_0 : i32, i32
  }
}

</mosaic_0001>

<llo_original>
// kernel: simclr_forward.1
$region0: #{simclr_forward.1}
  #allocation0 [shape = 'u32[]', space=smem, size = 0x4, offset = 0x4, fixed_abs, tag = 'smem constant byte address 0x4 - core index']
  #allocation1 [shape = 'u32[144,128]{1,0:T(1,128)}', space=vmem, size = 0x12000, scoped, tag = 'internal scratch']
  #allocation2 [shape = 'f32[1,128]{1,0:T(1,128)}', space=vmem, size = 0x200, scoped, tag = 'scratch operand']
  #allocation3 [shape = 'f32[1,128]{1,0:T(1,128)}', space=vmem, size = 0x200, scoped, tag = 'scratch operand']
  #allocation4 [shape = 'f32[1,2,128]{2,1,0:T(2,128)}', space=vmem, size = 0x400, scoped, tag = 'scratch operand']
  #allocation5 [shape = 'bf16[1,512,128]{2,1,0:T(16,128)(2,1)}', space=vmem, size = 0x20000, scoped, tag = 'scratch operand']
  %s0 = inlined_call_operand.vmem [shape: bf16[512,36], index: 0, kind: input, shape index: {}]
  %s1 = inlined_call_operand.vmem [shape: bf16[36,128], index: 1, kind: input, shape index: {}]
  %s2 = inlined_call_operand.vmem [shape: f32[1,128], index: 2, kind: input, shape index: {}]
  %s3 = inlined_call_operand.vmem [shape: f32[1,128], index: 3, kind: input, shape index: {}]
  %s4 = inlined_call_operand.vmem [shape: bf16[3,128,128], index: 4, kind: input, shape index: {}]
  %s5 = inlined_call_operand.vmem [shape: f32[3,1,128], index: 5, kind: input, shape index: {}]
  %s6 = inlined_call_operand.vmem [shape: f32[3,1,128], index: 6, kind: input, shape index: {}]
  %s7 = inlined_call_operand.vmem [shape: f32[3,1,128], index: 7, kind: input, shape index: {}]
  %s8 = inlined_call_operand.vmem [shape: bf16[128,128], index: 8, kind: input, shape index: {}]
  %s9 = inlined_call_operand.vmem [shape: f32[1,128], index: 9, kind: input, shape index: {}]
  %s10 = inlined_call_operand.hbm [shape: f32[2,128], index: 10, kind: output, shape index: {0}]
  %s11 = inlined_call_operand.hbm [shape: f32[2,128], index: 11, kind: output, shape index: {1}]
  %12 = xla_tuple %s10, %s11
  %s13 = sld [smem:[#allocation0]]
  $region101: #{simclr_forward.1} parent=0
    _
  %s15 = ssub.s32 1, %s13
  %s16 = scalar_select 0, %s15, %s13
  $region1: #{simclr_forward.1} parent=0
    #allocation6 [shape = 'u8[1024]{0}', space=vmem, size = 0x400, scoped, tag = 'output window, operand 0, single buffered']
    #allocation7 [shape = 's32[2]{0}', space=sflag, size = 0x8, scoped, tag = 'scoped memory for simclr_forward.1']
    #allocation8 [shape = 'u8[1024]{0}', space=vmem, size = 0x400, scoped, tag = 'output window, operand 1, single buffered']
    #allocation9 [shape = 's32[1]{0}', space=sflag, size = 0x4, scoped, tag = 'scoped memory for simclr_forward.1']
    %17 = vsyncpa [#allocation7], 0
    %18 = vsyncpa [#allocation9], 0
    loop: start=0, step=1, limit=4
    $region2: #{simclr_forward.1} parent=1 // loop_pre_header
      _
    $region3: #{simclr_forward.1} parent=1 // loop_header
      %s20 = sphi 0, %s24
      %p21 = scmp.ge.s32.totalorder %s20, 4
      %s27 = sphi 0, %s39
      %s28 = sphi 0, %s35
      %s29 = sphi 0, %s27
      %s30 = sphi 0, %s28
      %s31 = sphi 0, %s29
      %s32 = sphi 0, %s30
      %s46 = sphi 0, %s48
      %s49 = sphi 0, %s46
      %s50 = sphi 0, %s49
      %s66 = sphi 0, %s50
      %s70 = sphi 0, %s70
      %s72 = sphi 0, %s70
      %s73 = sphi 0, %s72
      %s87 = sphi 0, %s73
      %s91 = sphi 0, %s91
      %s93 = sphi 0, %s91
      %s94 = sphi 0, %s93
      %s108 = sphi 0, %s94
      %s112 = sphi 0, %s112
      %s114 = sphi 0, %s112
      %s115 = sphi 0, %s114
      %s129 = sphi 0, %s115
      %s133 = sphi 0, %s133
      %s135 = sphi 0, %s133
      %s136 = sphi 0, %s135
      %s150 = sphi 0, %s136
      %s154 = sphi 0, %s154
      %s156 = sphi 0, %s154
      %s157 = sphi 0, %s156
      %s171 = sphi 0, %s157
      %s175 = sphi 0, %s175
      %s177 = sphi 0, %s175
      %s178 = sphi 0, %s177
      %s192 = sphi 0, %s178
      %s196 = sphi 0, %s196
      %s198 = sphi 0, %s196
      %s199 = sphi 0, %s198
      %s213 = sphi 0, %s199
      %s217 = sphi 0, %s217
      %s219 = sphi 0, %s217
      %s220 = sphi 0, %s219
      %s234 = sphi 0, %s220
      %s238 = sphi 0, %s238
      %s240 = sphi 0, %s238
      %s241 = sphi 0, %s240
      %s255 = sphi 0, %s241
      %s259 = sphi 0, %s259
      %s261 = sphi 0, %s259
      %s262 = sphi 0, %s261
      %s276 = sphi 0, %s262
      %s280 = sphi 0, %s280
      %s282 = sphi 0, %s280
      %s283 = sphi 0, %s282
      %s297 = sphi 0, %s283
    $region4: #{simclr_forward.1} parent=1 // loop_header_branch
      %23 = sbr.rel (%p21) target = $region8
    $region5: #{simclr_forward.1} parent=1 // loop_body
      %s25 = ssub.s32 %s20, 1
      %s26 = ssub.s32 %s20, 2
      %s33 = sadd.s32 1, %s28
      %p34 = scmp.ge.s32.totalorder %s33, 1
      %s35 = scalar_select %p34, 0, %s33
      %s36 = sadd.s32 1, %s27
      %s37 = scalar_select %p34, %s36, %s27
      %p38 = scmp.ge.s32.totalorder %s37, 2
      %s39 = scalar_select %p38, 0, %s37
      %s40 = ssub.s32 1, %s27
      %s41 = smul.u32 %s28, %s40
      %s42 = ssub.s32 1, %s39
      %s43 = smul.u32 %s35, %s42
      %s44 = ssub.s32 %s41, %s43
      %p45 = scmp.eq.s32.totalorder %s44, 0
      %s47 = sadd.s32 %s46, 1
      %s48 = scalar_select %p45, %s46, %s47
      %p51 = pneg %p45
      %p52 = scmp.eq.s32.totalorder %s20, 1
      %p53 = por %p51, %p52
      %p54 = scmp.ne.s32.totalorder %s46, %s49
      %p55 = scmp.eq.s32.totalorder %s20, 0
      %p56 = por %p54, %p55
      %p57 = scmp.ne.s32.totalorder %s46, %s49
      %p58 = scmp.eq.s32.totalorder %s25, 1
      %p59 = por %p57, %p58
      %p60 = scmp.ne.s32.totalorder %s49, %s50
      %p61 = scmp.eq.s32.totalorder %s25, 0
      %p62 = por %p60, %p61
      %p63 = scmp.ne.s32.totalorder %s49, %s50
      %p64 = scmp.eq.s32.totalorder %s26, 1
      %p65 = por %p63, %p64
      %p67 = scmp.ne.s32.totalorder %s50, %s66
      %p68 = scmp.eq.s32.totalorder %s26, 0
      %p69 = por %p67, %p68
      %s71 = sadd.s32 %s70, 1
      %p74 = scmp.eq.s32.totalorder %s20, 1
      %p75 = scmp.ne.s32.totalorder %s70, %s72
      %p76 = scmp.eq.s32.totalorder %s20, 0
      %p77 = por %p75, %p76
      %p78 = scmp.ne.s32.totalorder %s70, %s72
      %p79 = scmp.eq.s32.totalorder %s25, 1
      %p80 = por %p78, %p79
      %p81 = scmp.ne.s32.totalorder %s72, %s73
      %p82 = scmp.eq.s32.totalorder %s25, 0
      %p83 = por %p81, %p82
      %p84 = scmp.ne.s32.totalorder %s72, %s73
      %p85 = scmp.eq.s32.totalorder %s26, 1
      %p86 = por %p84, %p85
      %p88 = scmp.ne.s32.totalorder %s73, %s87
      %p89 = scmp.eq.s32.totalorder %s26, 0
      %p90 = por %p88, %p89
      %s92 = sadd.s32 %s91, 1
      %p95 = scmp.eq.s32.totalorder %s20, 1
      %p96 = scmp.ne.s32.totalorder %s91, %s93
      %p97 = scmp.eq.s32.totalorder %s20, 0
      %p98 = por %p96, %p97
      %p99 = scmp.ne.s32.totalorder %s91, %s93
      %p100 = scmp.eq.s32.totalorder %s25, 1
      %p101 = por %p99, %p100
      %p102 = scmp.ne.s32.totalorder %s93, %s94
      %p103 = scmp.eq.s32.totalorder %s25, 0
      %p104 = por %p102, %p103
      %p105 = scmp.ne.s32.totalorder %s93, %s94
      %p106 = scmp.eq.s32.totalorder %s26, 1
      %p107 = por %p105, %p106
      %p109 = scmp.ne.s32.totalorder %s94, %s108
      %p110 = scmp.eq.s32.totalorder %s26, 0
      %p111 = por %p109, %p110
      %s113 = sadd.s32 %s112, 1
      %p116 = scmp.eq.s32.totalorder %s20, 1
      %p117 = scmp.ne.s32.totalorder %s112, %s114
      %p118 = scmp.eq.s32.totalorder %s20, 0
      %p119 = por %p117, %p118
      %p120 = scmp.ne.s32.totalorder %s112, %s114
      %p121 = scmp.eq.s32.totalorder %s25, 1
      %p122 = por %p120, %p121
      %p123 = scmp.ne.s32.totalorder %s114, %s115
      %p124 = scmp.eq.s32.totalorder %s25, 0
      %p125 = por %p123, %p124
      %p126 = scmp.ne.s32.totalorder %s114, %s115
      %p127 = scmp.eq.s32.totalorder %s26, 1
      %p128 = por %p126, %p127
      %p130 = scmp.ne.s32.totalorder %s115, %s129
      %p131 = scmp.eq.s32.totalorder %s26, 0
      %p132 = por %p130, %p131
      %s134 = sadd.s32 %s133, 1
      %p137 = scmp.eq.s32.totalorder %s20, 1
      %p138 = scmp.ne.s32.totalorder %s133, %s135
      %p139 = scmp.eq.s32.totalorder %s20, 0
      %p140 = por %p138, %p139
      %p141 = scmp.ne.s32.totalorder %s133, %s135
      %p142 = scmp.eq.s32.totalorder %s25, 1
      %p143 = por %p141, %p142
      %p144 = scmp.ne.s32.totalorder %s135, %s136
      %p145 = scmp.eq.s32.totalorder %s25, 0
      %p146 = por %p144, %p145
      %p147 = scmp.ne.s32.totalorder %s135, %s136
      %p148 = scmp.eq.s32.totalorder %s26, 1
      %p149 = por %p147, %p148
      %p151 = scmp.ne.s32.totalorder %s136, %s150
      %p152 = scmp.eq.s32.totalorder %s26, 0
      %p153 = por %p151, %p152
      %s155 = sadd.s32 %s154, 1
      %p158 = scmp.eq.s32.totalorder %s20, 1
      %p159 = scmp.ne.s32.totalorder %s154, %s156
      %p160 = scmp.eq.s32.totalorder %s20, 0
      %p161 = por %p159, %p160
      %p162 = scmp.ne.s32.totalorder %s154, %s156
      %p163 = scmp.eq.s32.totalorder %s25, 1
      %p164 = por %p162, %p163
      %p165 = scmp.ne.s32.totalorder %s156, %s157
      %p166 = scmp.eq.s32.totalorder %s25, 0
      %p167 = por %p165, %p166
      %p168 = scmp.ne.s32.totalorder %s156, %s157
      %p169 = scmp.eq.s32.totalorder %s26, 1
      %p170 = por %p168, %p169
      %p172 = scmp.ne.s32.totalorder %s157, %s171
      %p173 = scmp.eq.s32.totalorder %s26, 0
      %p174 = por %p172, %p173
      %s176 = sadd.s32 %s175, 1
      %p179 = scmp.eq.s32.totalorder %s20, 1
      %p180 = scmp.ne.s32.totalorder %s175, %s177
      %p181 = scmp.eq.s32.totalorder %s20, 0
      %p182 = por %p180, %p181
      %p183 = scmp.ne.s32.totalorder %s175, %s177
      %p184 = scmp.eq.s32.totalorder %s25, 1
      %p185 = por %p183, %p184
      %p186 = scmp.ne.s32.totalorder %s177, %s178
      %p187 = scmp.eq.s32.totalorder %s25, 0
      %p188 = por %p186, %p187
      %p189 = scmp.ne.s32.totalorder %s177, %s178
      %p190 = scmp.eq.s32.totalorder %s26, 1
      %p191 = por %p189, %p190
      %p193 = scmp.ne.s32.totalorder %s178, %s192
      %p194 = scmp.eq.s32.totalorder %s26, 0
      %p195 = por %p193, %p194
      %s197 = sadd.s32 %s196, 1
      %p200 = scmp.eq.s32.totalorder %s20, 1
      %p201 = scmp.ne.s32.totalorder %s196, %s198
      %p202 = scmp.eq.s32.totalorder %s20, 0
      %p203 = por %p201, %p202
      %p204 = scmp.ne.s32.totalorder %s196, %s198
      %p205 = scmp.eq.s32.totalorder %s25, 1
      %p206 = por %p204, %p205
      %p207 = scmp.ne.s32.totalorder %s198, %s199
      %p208 = scmp.eq.s32.totalorder %s25, 0
      %p209 = por %p207, %p208
      %p210 = scmp.ne.s32.totalorder %s198, %s199
      %p211 = scmp.eq.s32.totalorder %s26, 1
      %p212 = por %p210, %p211
      %p214 = scmp.ne.s32.totalorder %s199, %s213
      %p215 = scmp.eq.s32.totalorder %s26, 0
      %p216 = por %p214, %p215
      %s218 = sadd.s32 %s217, 1
      %p221 = scmp.eq.s32.totalorder %s20, 1
      %p222 = scmp.ne.s32.totalorder %s217, %s219
      %p223 = scmp.eq.s32.totalorder %s20, 0
      %p224 = por %p222, %p223
      %p225 = scmp.ne.s32.totalorder %s217, %s219
      %p226 = scmp.eq.s32.totalorder %s25, 1
      %p227 = por %p225, %p226
      %p228 = scmp.ne.s32.totalorder %s219, %s220
      %p229 = scmp.eq.s32.totalorder %s25, 0
      %p230 = por %p228, %p229
      %p231 = scmp.ne.s32.totalorder %s219, %s220
      %p232 = scmp.eq.s32.totalorder %s26, 1
      %p233 = por %p231, %p232
      %p235 = scmp.ne.s32.totalorder %s220, %s234
      %p236 = scmp.eq.s32.totalorder %s26, 0
      %p237 = por %p235, %p236
      %s239 = sadd.s32 %s238, 1
      %p242 = scmp.eq.s32.totalorder %s20, 1
      %p243 = scmp.ne.s32.totalorder %s238, %s240
      %p244 = scmp.eq.s32.totalorder %s20, 0
      %p245 = por %p243, %p244
      %p246 = scmp.ne.s32.totalorder %s238, %s240
      %p247 = scmp.eq.s32.totalorder %s25, 1
      %p248 = por %p246, %p247
      %p249 = scmp.ne.s32.totalorder %s240, %s241
      %p250 = scmp.eq.s32.totalorder %s25, 0
      %p251 = por %p249, %p250
      %p252 = scmp.ne.s32.totalorder %s240, %s241
      %p253 = scmp.eq.s32.totalorder %s26, 1
      %p254 = por %p252, %p253
      %p256 = scmp.ne.s32.totalorder %s241, %s255
      %p257 = scmp.eq.s32.totalorder %s26, 0
      %p258 = por %p256, %p257
      %s260 = sadd.s32 %s259, 1
      %p263 = scmp.eq.s32.totalorder %s20, 1
      %p264 = scmp.ne.s32.totalorder %s259, %s261
      %p265 = scmp.eq.s32.totalorder %s20, 0
      %p266 = por %p264, %p265
      %p267 = scmp.ne.s32.totalorder %s259, %s261
      %p268 = scmp.eq.s32.totalorder %s25, 1
      %p269 = por %p267, %p268
      %p270 = scmp.ne.s32.totalorder %s261, %s262
      %p271 = scmp.eq.s32.totalorder %s25, 0
      %p272 = por %p270, %p271
      %p273 = scmp.ne.s32.totalorder %s261, %s262
      %p274 = scmp.eq.s32.totalorder %s26, 1
      %p275 = por %p273, %p274
      %p277 = scmp.ne.s32.totalorder %s262, %s276
      %p278 = scmp.eq.s32.totalorder %s26, 0
      %p279 = por %p277, %p278
      %s281 = sadd.s32 %s280, 1
      %p284 = scmp.eq.s32.totalorder %s20, 1
      %p285 = scmp.ne.s32.totalorder %s280, %s282
      %p286 = scmp.eq.s32.totalorder %s20, 0
      %p287 = por %p285, %p286
      %p288 = scmp.ne.s32.totalorder %s280, %s282
      %p289 = scmp.eq.s32.totalorder %s25, 1
      %p290 = por %p288, %p289
      %p291 = scmp.ne.s32.totalorder %s282, %s283
      %p292 = scmp.eq.s32.totalorder %s25, 0
      %p293 = por %p291, %p292
      %p294 = scmp.ne.s32.totalorder %s282, %s283
      %p295 = scmp.eq.s32.totalorder %s26, 1
      %p296 = por %p294, %p295
      %p298 = scmp.ne.s32.totalorder %s283, %s297
      %p299 = scmp.eq.s32.totalorder %s26, 0
      %p300 = por %p298, %p299
      %p301 = scmp.le.s32.totalorder 1, %s20
      %p302 = scmp.lt.s32.totalorder %s20, 3
      %p303 = pnand %p301, %p302
      %p304 = pneg %p303
      // Predicated region
      $region9: #{simclr_forward.1} parent=5 // pred_check
        _
      $region10: #{simclr_forward.1} parent=5 // pred_check_branch
        %306 = sbr.rel (%p303) target = $region12
      $region11: #{simclr_forward.1} parent=5 // pred_region
        %s307 = ssub.s32 %s20, 1
        // Predicated region
        $region13: #{simclr_forward.1} parent=11 // pred_check
          %p308 = pneg %p83
        $region14: #{simclr_forward.1} parent=11 // pred_check_branch
          %310 = sbr.rel (%p308) target = $region16
        $region15: #{simclr_forward.1} parent=11 // pred_region
          _
        $region16: #{simclr_forward.1} parent=11 // pred_fallthru
          _
        // Predicated region
        $region17: #{simclr_forward.1} parent=11 // pred_check
          %p311 = pneg %p104
        $region18: #{simclr_forward.1} parent=11 // pred_check_branch
          %313 = sbr.rel (%p311) target = $region20
        $region19: #{simclr_forward.1} parent=11 // pred_region
          _
        $region20: #{simclr_forward.1} parent=11 // pred_fallthru
          _
        // Predicated region
        $region21: #{simclr_forward.1} parent=11 // pred_check
          %p314 = pneg %p125
        $region22: #{simclr_forward.1} parent=11 // pred_check_branch
          %316 = sbr.rel (%p314) target = $region24
        $region23: #{simclr_forward.1} parent=11 // pred_region
          _
        $region24: #{simclr_forward.1} parent=11 // pred_fallthru
          _
        // Predicated region
        $region25: #{simclr_forward.1} parent=11 // pred_check
          %p317 = pneg %p146
        $region26: #{simclr_forward.1} parent=11 // pred_check_branch
          %319 = sbr.rel (%p317) target = $region28
        $region27: #{simclr_forward.1} parent=11 // pred_region
          _
        $region28: #{simclr_forward.1} parent=11 // pred_fallthru
          _
        // Predicated region
        $region29: #{simclr_forward.1} parent=11 // pred_check
          %p320 = pneg %p167
        $region30: #{simclr_forward.1} parent=11 // pred_check_branch
          %322 = sbr.rel (%p320) target = $region32
        $region31: #{simclr_forward.1} parent=11 // pred_region
          _
        $region32: #{simclr_forward.1} parent=11 // pred_fallthru
          _
        // Predicated region
        $region33: #{simclr_forward.1} parent=11 // pred_check
          %p323 = pneg %p188
        $region34: #{simclr_forward.1} parent=11 // pred_check_branch
          %325 = sbr.rel (%p323) target = $region36
        $region35: #{simclr_forward.1} parent=11 // pred_region
          _
        $region36: #{simclr_forward.1} parent=11 // pred_fallthru
          _
        // Predicated region
        $region37: #{simclr_forward.1} parent=11 // pred_check
          %p326 = pneg %p209
        $region38: #{simclr_forward.1} parent=11 // pred_check_branch
          %328 = sbr.rel (%p326) target = $region40
        $region39: #{simclr_forward.1} parent=11 // pred_region
          _
        $region40: #{simclr_forward.1} parent=11 // pred_fallthru
          _
        // Predicated region
        $region41: #{simclr_forward.1} parent=11 // pred_check
          %p329 = pneg %p230
        $region42: #{simclr_forward.1} parent=11 // pred_check_branch
          %331 = sbr.rel (%p329) target = $region44
        $region43: #{simclr_forward.1} parent=11 // pred_region
          _
        $region44: #{simclr_forward.1} parent=11 // pred_fallthru
          _
        // Predicated region
        $region45: #{simclr_forward.1} parent=11 // pred_check
          %p332 = pneg %p251
        $region46: #{simclr_forward.1} parent=11 // pred_check_branch
          %334 = sbr.rel (%p332) target = $region48
        $region47: #{simclr_forward.1} parent=11 // pred_region
          _
        $region48: #{simclr_forward.1} parent=11 // pred_fallthru
          _
      $region12: #{simclr_forward.1} parent=5 // pred_fallthru
        _
      %p335 = scmp.lt.s32.totalorder %s20, 2
      // Predicated region
      $region49: #{simclr_forward.1} parent=5 // pred_check
        %p336 = pneg %p335
      $region50: #{simclr_forward.1} parent=5 // pred_check_branch
        %338 = sbr.rel (%p336) target = $region52
      $region51: #{simclr_forward.1} parent=5 // pred_region
        // Predicated region
        $region53: #{simclr_forward.1} parent=51 // pred_check
          %p339 = pneg %p56
        $region54: #{simclr_forward.1} parent=51 // pred_check_branch
          %341 = sbr.rel (%p339) target = $region56
        $region55: #{simclr_forward.1} parent=51 // pred_region
          %s342 = ssub.s32 1, %s27
          %s343 = smul.u32 %s28, %s342
          %s344 = smul.u32 64, %s343
          %p345 = scmp.lt.s32.totalorder %s344, 63
          %s346 = scalar_select %p345, %s344, 63
          %s347 = smul.addr %s346, 4
          %s348 = scalar_lea.vmem %s0, %s347
          %s349 = ssub.s32 1, %s27
          %s350 = smul.u32 %s28, %s349
          %s351 = smul.u32 64, %s350
        $region56: #{simclr_forward.1} parent=51 // pred_fallthru
          _
      $region52: #{simclr_forward.1} parent=5 // pred_fallthru
        _
      %p352 = scmp.le.s32.totalorder 1, %s20
      %p353 = scmp.lt.s32.totalorder %s20, 3
      %p354 = pnand %p352, %p353
      %p355 = pneg %p354
      // Predicated region
      $region57: #{simclr_forward.1} parent=5 // pred_check
        _
      $region58: #{simclr_forward.1} parent=5 // pred_check_branch
        %357 = sbr.rel (%p354) target = $region60
      $region59: #{simclr_forward.1} parent=5 // pred_region
        %s358 = ssub.s32 %s20, 1
        %s359 = ssub.s32 1, %s29
        %s360 = smul.u32 %s30, %s359
        %s361 = smul.u32 64, %s360
        %p362 = scmp.lt.s32.totalorder %s361, 63
        %s363 = scalar_select %p362, %s361, 63
        %s364 = smul.addr %s363, 4
        %s365 = scalar_lea.vmem %s0, %s364
        %p366 = pneg %p62
        %p367 = pneg %p59
        %p368 = pneg %p83
        %p369 = pneg %p80
        %p370 = pneg %p104
        %p371 = pneg %p101
        %p372 = pneg %p125
        %p373 = pneg %p122
        %p374 = pneg %p146
        %p375 = pneg %p143
        %p376 = pneg %p167
        %p377 = pneg %p164
        %p378 = pneg %p188
        %p379 = pneg %p185
        %p380 = pneg %p209
        %p381 = pneg %p206
        %p382 = pneg %p230
        %p383 = pneg %p227
        %p384 = pneg %p251
        %p385 = pneg %p248
        %p386 = pneg %p272
        %p387 = pneg %p269
        %p388 = pneg %p293
        %p389 = pneg %p290
        %s390 = ssub.s32 1, %s29
        %s391 = smul.u32 %s30, %s390
        %s392 = smul.u32 64, %s391
        %p393 = scmp.lt.s32.totalorder %s392, 63
        %s394 = scalar_select %p393, %s392, 63
        %s395 = smul.addr %s394, 4
        %s396 = scalar_lea.vmem %s0, %s395
        %s397 = ssub.s32 1, %s29
        %s398 = smul.u32 %s30, %s397
        %s399 = smul.u32 64, %s398
        %p401 = scmp.eq.s32.totalorder %s29, 0
        %p402 = scmp.eq.s32.totalorder %s30, 0
        %p403 = pnand %p401, %p402
        %p404 = pneg %p403
        // Predicated region
        $region61: #{simclr_forward.1} parent=59 // pred_check
          _
        $region62: #{simclr_forward.1} parent=59 // pred_check_branch
          %406 = sbr.rel (%p403) target = $region64
        $region63: #{simclr_forward.1} parent=59 // pred_region
          %407 = vst [vmem:[#allocation2] sm:$0x1] 0.0
          %408 = vst [vmem:[#allocation3] sm:$0x1] 0.0
          %409 = vst [vmem:[#allocation4] sm:$0x3] 0.0
        $region64: #{simclr_forward.1} parent=59 // pred_fallthru
          _
        // Predicated region
        $region65: #{simclr_forward.1} parent=59 // pred_check
          %p410 = pneg %p401
        $region66: #{simclr_forward.1} parent=59 // pred_check_branch
          %412 = sbr.rel (%p410) target = $region68
        $region67: #{simclr_forward.1} parent=59 // pred_region
          %v413 = vld [vmem:[%s396] sm:$0xf]
          %v414 = vld [vmem:[%s396 + $0x4] sm:$0xf]
          %v415 = vld [vmem:[%s396 + $0x8] sm:$0xf]
          %v416 = vld [vmem:[%s396 + $0xc] sm:$0xf]
          %v417 = vld [vmem:[%s396 + $0x10] sm:$0xf]
          %v418 = vld [vmem:[%s396 + $0x14] sm:$0xf]
          %v419 = vld [vmem:[%s396 + $0x18] sm:$0xf]
          %v420 = vld [vmem:[%s396 + $0x1c] sm:$0xf]
          %v421 = vld [vmem:[%s396 + $0x20] sm:$0xf]
          %v422 = vld [vmem:[%s396 + $0x24] sm:$0xf]
          %v423 = vld [vmem:[%s396 + $0x28] sm:$0xf]
          %v424 = vld [vmem:[%s396 + $0x2c] sm:$0xf]
          %v425 = vld [vmem:[%s396 + $0x30] sm:$0xf]
          %v426 = vld [vmem:[%s396 + $0x34] sm:$0xf]
          %v427 = vld [vmem:[%s396 + $0x38] sm:$0xf]
          %v428 = vld [vmem:[%s396 + $0x3c] sm:$0xf]
          %v429 = vld [vmem:[%s396 + $0x40] sm:$0xf]
          %v430 = vld [vmem:[%s396 + $0x44] sm:$0xf]
          %v431 = vld [vmem:[%s396 + $0x48] sm:$0xf]
          %v432 = vld [vmem:[%s396 + $0x4c] sm:$0xf]
          %v433 = vld [vmem:[%s396 + $0x50] sm:$0xf]
          %v434 = vld [vmem:[%s396 + $0x54] sm:$0xf]
          %v435 = vld [vmem:[%s396 + $0x58] sm:$0xf]
          %v436 = vld [vmem:[%s396 + $0x5c] sm:$0xf]
          %v437 = vld [vmem:[%s396 + $0x60] sm:$0xf]
          %v438 = vld [vmem:[%s396 + $0x64] sm:$0xf]
          %v439 = vld [vmem:[%s396 + $0x68] sm:$0xf]
          %v440 = vld [vmem:[%s396 + $0x6c] sm:$0xf]
          %v441 = vld [vmem:[%s396 + $0x70] sm:$0xf]
          %v442 = vld [vmem:[%s396 + $0x74] sm:$0xf]
          %v443 = vld [vmem:[%s396 + $0x78] sm:$0xf]
          %v444 = vld [vmem:[%s396 + $0x7c] sm:$0xf]
          %v445 = vld [vmem:[%s396 + $0x80] sm:$0xf]
          %v446 = vld [vmem:[%s396 + $0x84] sm:$0xf]
          %v447 = vld [vmem:[%s396 + $0x88] sm:$0xf]
          %v448 = vld [vmem:[%s396 + $0x8c] sm:$0xf]
          %v449 = vld [vmem:[%s396 + $0x90] sm:$0xf]
          %v450 = vld [vmem:[%s396 + $0x94] sm:$0xf]
          %v451 = vld [vmem:[%s396 + $0x98] sm:$0xf]
          %v452 = vld [vmem:[%s396 + $0x9c] sm:$0xf]
          %v453 = vld [vmem:[%s396 + $0xa0] sm:$0xf]
          %v454 = vld [vmem:[%s396 + $0xa4] sm:$0xf]
          %v455 = vld [vmem:[%s396 + $0xa8] sm:$0xf]
          %v456 = vld [vmem:[%s396 + $0xac] sm:$0xf]
          %v457 = vld [vmem:[%s396 + $0xb0] sm:$0xf]
          %v458 = vld [vmem:[%s396 + $0xb4] sm:$0xf]
          %v459 = vld [vmem:[%s396 + $0xb8] sm:$0xf]
          %v460 = vld [vmem:[%s396 + $0xbc] sm:$0xf]
          %v461 = vld [vmem:[%s396 + $0xc0] sm:$0xf]
          %v462 = vld [vmem:[%s396 + $0xc4] sm:$0xf]
          %v463 = vld [vmem:[%s396 + $0xc8] sm:$0xf]
          %v464 = vld [vmem:[%s396 + $0xcc] sm:$0xf]
          %v465 = vld [vmem:[%s396 + $0xd0] sm:$0xf]
          %v466 = vld [vmem:[%s396 + $0xd4] sm:$0xf]
          %v467 = vld [vmem:[%s396 + $0xd8] sm:$0xf]
          %v468 = vld [vmem:[%s396 + $0xdc] sm:$0xf]
          %v469 = vld [vmem:[%s396 + $0xe0] sm:$0xf]
          %v470 = vld [vmem:[%s396 + $0xe4] sm:$0xf]
          %v471 = vld [vmem:[%s396 + $0xe8] sm:$0xf]
          %v472 = vld [vmem:[%s396 + $0xec] sm:$0xf]
          %v473 = vld [vmem:[%s396 + $0xf0] sm:$0xf]
          %v474 = vld [vmem:[%s396 + $0xf4] sm:$0xf]
          %v475 = vld [vmem:[%s396 + $0xf8] sm:$0xf]
          %v476 = vld [vmem:[%s396 + $0xfc] sm:$0xf]
          %v477 = vld [vmem:[%s1] sm:$0xf]
          %v478 = vld [vmem:[%s1 + $0x4] sm:$0xf]
          %v479 = vld [vmem:[%s1 + $0x8] sm:$0xf]
          %v480 = vld [vmem:[%s1 + $0xc] sm:$0xf]
          %v481 = vld [vmem:[%s1 + $0x10] sm:$0x3]
          %v546 = vunpack.c.l.b16 %v413
          %v547 = vunpack.c.l.b16 %v414
          %v548 = vunpack.c.l.b16 %v415
          %v549 = vunpack.c.l.b16 %v416
          %v550 = vunpack.c.l.b16 %v417
          %v551 = vunpack.c.l.b16 %v418
          %v552 = vunpack.c.l.b16 %v419
          %v553 = vunpack.c.l.b16 %v420
          %v554 = vunpack.c.l.b16 %v421
          %v555 = vunpack.c.l.b16 %v422
          %v556 = vunpack.c.l.b16 %v423
          %v557 = vunpack.c.l.b16 %v424
          %v558 = vunpack.c.l.b16 %v425
          %v559 = vunpack.c.l.b16 %v426
          %v560 = vunpack.c.l.b16 %v427
          %v561 = vunpack.c.l.b16 %v428
          %v562 = vunpack.c.l.b16 %v429
          %v563 = vunpack.c.l.b16 %v430
          %v564 = vunpack.c.l.b16 %v431
          %v565 = vunpack.c.l.b16 %v432
          %v566 = vunpack.c.l.b16 %v433
          %v567 = vunpack.c.l.b16 %v434
          %v568 = vunpack.c.l.b16 %v435
          %v569 = vunpack.c.l.b16 %v436
          %v570 = vunpack.c.l.b16 %v437
          %v571 = vunpack.c.l.b16 %v438
          %v572 = vunpack.c.l.b16 %v439
          %v573 = vunpack.c.l.b16 %v440
          %v574 = vunpack.c.l.b16 %v441
          %v575 = vunpack.c.l.b16 %v442
          %v576 = vunpack.c.l.b16 %v443
          %v577 = vunpack.c.l.b16 %v444
          %v578 = vunpack.c.l.b16 %v445
          %v579 = vunpack.c.l.b16 %v446
          %v580 = vunpack.c.l.b16 %v447
          %v581 = vunpack.c.l.b16 %v448
          %v582 = vunpack.c.l.b16 %v449
          %v583 = vunpack.c.l.b16 %v450
          %v584 = vunpack.c.l.b16 %v451
          %v585 = vunpack.c.l.b16 %v452
          %v586 = vunpack.c.l.b16 %v453
          %v587 = vunpack.c.l.b16 %v454
          %v588 = vunpack.c.l.b16 %v455
          %v589 = vunpack.c.l.b16 %v456
          %v590 = vunpack.c.l.b16 %v457
          %v591 = vunpack.c.l.b16 %v458
          %v592 = vunpack.c.l.b16 %v459
          %v593 = vunpack.c.l.b16 %v460
          %v594 = vunpack.c.l.b16 %v461
          %v595 = vunpack.c.l.b16 %v462
          %v596 = vunpack.c.l.b16 %v463
          %v597 = vunpack.c.l.b16 %v464
          %v598 = vunpack.c.l.b16 %v465
          %v599 = vunpack.c.l.b16 %v466
          %v600 = vunpack.c.l.b16 %v467
          %v601 = vunpack.c.l.b16 %v468
          %v602 = vunpack.c.l.b16 %v469
          %v603 = vunpack.c.l.b16 %v470
          %v604 = vunpack.c.l.b16 %v471
          %v605 = vunpack.c.l.b16 %v472
          %v606 = vunpack.c.l.b16 %v473
          %v607 = vunpack.c.l.b16 %v474
          %v608 = vunpack.c.l.b16 %v475
          %v609 = vunpack.c.l.b16 %v476
          %v610 = vpack.c.b16 %v547, %v546
          %v611 = vpack.c.b16 %v549, %v548
          %v612 = vpack.c.b16 %v551, %v550
          %v613 = vpack.c.b16 %v553, %v552
          %v614 = vpack.c.b16 %v555, %v554
          %v615 = vpack.c.b16 %v557, %v556
          %v616 = vpack.c.b16 %v559, %v558
          %v617 = vpack.c.b16 %v561, %v560
          %v618 = vpack.c.b16 %v563, %v562
          %v619 = vpack.c.b16 %v565, %v564
          %v620 = vpack.c.b16 %v567, %v566
          %v621 = vpack.c.b16 %v569, %v568
          %v622 = vpack.c.b16 %v571, %v570
          %v623 = vpack.c.b16 %v573, %v572
          %v624 = vpack.c.b16 %v575, %v574
          %v625 = vpack.c.b16 %v577, %v576
          %v626 = vpack.c.b16 %v579, %v578
          %v627 = vpack.c.b16 %v581, %v580
          %v628 = vpack.c.b16 %v583, %v582
          %v629 = vpack.c.b16 %v585, %v584
          %v630 = vpack.c.b16 %v587, %v586
          %v631 = vpack.c.b16 %v589, %v588
          %v632 = vpack.c.b16 %v591, %v590
          %v633 = vpack.c.b16 %v593, %v592
          %v634 = vpack.c.b16 %v595, %v594
          %v635 = vpack.c.b16 %v597, %v596
          %v636 = vpack.c.b16 %v599, %v598
          %v637 = vpack.c.b16 %v601, %v600
          %v638 = vpack.c.b16 %v603, %v602
          %v639 = vpack.c.b16 %v605, %v604
          %v640 = vpack.c.b16 %v607, %v606
          %v641 = vpack.c.b16 %v609, %v608
          %v647 = vunpack.c.l.b16 %v477
          %v648 = vunpack.c.l.b16 %v478
          %v649 = vunpack.c.l.b16 %v479
          %v650 = vunpack.c.l.b16 %v480
          %v651 = vunpack.c.l.b16 %v481
          %v652 = vpack.c.b16 %v648, %v647
          %v653 = vpack.c.b16 %v650, %v649
          %v654 = vpack.c.b16 %v651, %v651
          %vm657 = vcmask 293888
          %v659 = vsel %vm657, %v610, 0
          %v662 = vsel %vm657, %v611, 0
          %v665 = vsel %vm657, %v612, 0
          %v668 = vsel %vm657, %v613, 0
          %v671 = vsel %vm657, %v614, 0
          %v674 = vsel %vm657, %v615, 0
          %v677 = vsel %vm657, %v616, 0
          %v680 = vsel %vm657, %v617, 0
          %v683 = vsel %vm657, %v618, 0
          %v686 = vsel %vm657, %v619, 0
          %v689 = vsel %vm657, %v620, 0
          %v692 = vsel %vm657, %v621, 0
          %v695 = vsel %vm657, %v622, 0
          %v698 = vsel %vm657, %v623, 0
          %v701 = vsel %vm657, %v624, 0
          %v704 = vsel %vm657, %v625, 0
          %v707 = vsel %vm657, %v626, 0
          %v710 = vsel %vm657, %v627, 0
          %v713 = vsel %vm657, %v628, 0
          %v716 = vsel %vm657, %v629, 0
          %v719 = vsel %vm657, %v630, 0
          %v722 = vsel %vm657, %v631, 0
          %v725 = vsel %vm657, %v632, 0
          %v728 = vsel %vm657, %v633, 0
          %v731 = vsel %vm657, %v634, 0
          %v734 = vsel %vm657, %v635, 0
          %v737 = vsel %vm657, %v636, 0
          %v740 = vsel %vm657, %v637, 0
          %v743 = vsel %vm657, %v638, 0
          %v746 = vsel %vm657, %v639, 0
          %v749 = vsel %vm657, %v640, 0
          %v752 = vsel %vm657, %v641, 0
          %vm754 = vcmask 1041408
          %v756 = vsel %vm754, %v654, 0
          %758 = vmatprep.subr.bf16.mxu0 0
          %759 = vmatpush1.bf16.msra.mxu0 %v652
          %760 = vmatprep.subr.bf16.mxu0 0
          %761 = vmatpush1.bf16.msra.mxu0 %v653
          %762 = vmatprep.subr.bf16.mxu0 0
          %763 = vmatpush1.bf16.msra.mxu0 %v756
          %764 = vmatprep.subr.bf16.mxu0 0
          %765 = vmatpush1.bf16.msra.mxu0 0
          %766 = vmatprep.subr.bf16.mxu0 0
          %767 = vmatpush1.bf16.msra.mxu0 0
          %768 = vmatprep.subr.bf16.mxu0 0
          %769 = vmatpush1.bf16.msra.mxu0 0
          %770 = vmatprep.subr.bf16.mxu0 0
          %771 = vmatpush1.bf16.msra.mxu0 0
          %772 = vmatprep.subr.bf16.mxu0 0
          %773 = vmatpush1.bf16.msra.mxu0 0
          %774 = vmatprep.subr.bf16.mxu0 0
          %775 = vmatpush1.bf16.msra.mxu0 0
          %776 = vmatprep.subr.bf16.mxu0 0
          %777 = vmatpush1.bf16.msra.mxu0 0
          %778 = vmatprep.subr.bf16.mxu0 0
          %779 = vmatpush1.bf16.msra.mxu0 0
          %780 = vmatprep.subr.bf16.mxu0 0
          %781 = vmatpush1.bf16.msra.mxu0 0
          %782 = vmatprep.subr.bf16.mxu0 0
          %783 = vmatpush1.bf16.msra.mxu0 0
          %784 = vmatprep.subr.bf16.mxu0 0
          %785 = vmatpush1.bf16.msra.mxu0 0
          %786 = vmatprep.subr.bf16.mxu0 0
          %787 = vmatpush1.bf16.msra.mxu0 0
          %788 = vmatprep.subr.bf16.mxu0 0
          %789 = vmatpush1.bf16.msra.mxu0 0
          %790 = vmatprep.mubr.bf16.mxu0 0
          %791 = vmatmul.mubr.bf16.gmra.mrb[0].mxu0 %v659
          %v792 = vpop.f32.mrb[0].mxu0
          %v793 = vadd.f32 0.0, %v792
          %v794 = vpop.f32.mrb[0].mxu0
          %v795 = vpop.f32.mrb[0].mxu0
          %v796 = vadd.f32 0.0, %v795
          %v797 = vpop.f32.mrb[0].mxu0
          %798 = vmatprep.mubr.bf16.mxu0 0
          %799 = vmatmul.mubr.bf16.gmra.mrb[0].mxu0 %v662
          %v800 = vpop.f32.mrb[0].mxu0
          %v801 = vadd.f32 0.0, %v800
          %v802 = vpop.f32.mrb[0].mxu0
          %v803 = vpop.f32.mrb[0].mxu0
          %v804 = vadd.f32 0.0, %v803
          %v805 = vpop.f32.mrb[0].mxu0
          %806 = vmatprep.mubr.bf16.mxu0 0
          %807 = vmatmul.mubr.bf16.gmra.mrb[0].mxu0 %v665
          %v808 = vpop.f32.mrb[0].mxu0
          %v809 = vadd.f32 0.0, %v808
          %v810 = vpop.f32.mrb[0].mxu0
          %v811 = vpop.f32.mrb[0].mxu0
          %v812 = vadd.f32 0.0, %v811
          %v813 = vpop.f32.mrb[0].mxu0
          %814 = vmatprep.mubr.bf16.mxu0 0
          %815 = vmatmul.mubr.bf16.gmra.mrb[0].mxu0 %v668
          %v816 = vpop.f32.mrb[0].mxu0
          %v817 = vadd.f32 0.0, %v816
          %v818 = vpop.f32.mrb[0].mxu0
          %v819 = vpop.f32.mrb[0].mxu0
          %v820 = vadd.f32 0.0, %v819
          %v821 = vpop.f32.mrb[0].mxu0
          %822 = vmatprep.mubr.bf16.mxu0 0
          %823 = vmatmul.mubr.bf16.gmra.mrb[0].mxu0 %v671
          %v824 = vpop.f32.mrb[0].mxu0
          %v825 = vadd.f32 0.0, %v824
          %v826 = vpop.f32.mrb[0].mxu0
          %v827 = vpop.f32.mrb[0].mxu0
          %v828 = vadd.f32 0.0, %v827
          %v829 = vpop.f32.mrb[0].mxu0
          %830 = vmatprep.mubr.bf16.mxu0 0
          %831 = vmatmul.mubr.bf16.gmra.mrb[0].mxu0 %v674
          %v832 = vpop.f32.mrb[0].mxu0
          %v833 = vadd.f32 0.0, %v832
          %v834 = vpop.f32.mrb[0].mxu0
          %v835 = vpop.f32.mrb[0].mxu0
          %v836 = vadd.f32 0.0, %v835
          %v837 = vpop.f32.mrb[0].mxu0
          %838 = vmatprep.mubr.bf16.mxu0 0
          %839 = vmatmul.mubr.bf16.gmra.mrb[0].mxu0 %v677
          %v840 = vpop.f32.mrb[0].mxu0
          %v841 = vadd.f32 0.0, %v840
          %v842 = vpop.f32.mrb[0].mxu0
          %v843 = vpop.f32.mrb[0].mxu0
          %v844 = vadd.f32 0.0, %v843
          %v845 = vpop.f32.mrb[0].mxu0
          %846 = vmatprep.mubr.bf16.mxu0 0
          %847 = vmatmul.mubr.bf16.gmra.mrb[0].mxu0 %v680
          %v848 = vpop.f32.mrb[0].mxu0
          %v849 = vadd.f32 0.0, %v848
          %v850 = vpop.f32.mrb[0].mxu0
          %v851 = vpop.f32.mrb[0].mxu0
          %v852 = vadd.f32 0.0, %v851
          %v853 = vpop.f32.mrb[0].mxu0
          %854 = vmatprep.mubr.bf16.mxu0 0
          %855 = vmatmul.mubr.bf16.gmra.mrb[0].mxu0 %v683
          %v856 = vpop.f32.mrb[0].mxu0
          %v857 = vadd.f32 0.0, %v856
          %v858 = vpop.f32.mrb[0].mxu0
          %v859 = vpop.f32.mrb[0].mxu0
          %v860 = vadd.f32 0.0, %v859
          %v861 = vpop.f32.mrb[0].mxu0
          %862 = vmatprep.mubr.bf16.mxu0 0
          %863 = vmatmul.mubr.bf16.gmra.mrb[0].mxu0 %v686
          %v864 = vpop.f32.mrb[0].mxu0
          %v865 = vadd.f32 0.0, %v864
          %v866 = vpop.f32.mrb[0].mxu0
          %v867 = vpop.f32.mrb[0].mxu0
          %v868 = vadd.f32 0.0, %v867
          %v869 = vpop.f32.mrb[0].mxu0
          %870 = vmatprep.mubr.bf16.mxu0 0
          %871 = vmatmul.mubr.bf16.gmra.mrb[0].mxu0 %v689
          %v872 = vpop.f32.mrb[0].mxu0
          %v873 = vadd.f32 0.0, %v872
          %v874 = vpop.f32.mrb[0].mxu0
          %v875 = vpop.f32.mrb[0].mxu0
          %v876 = vadd.f32 0.0, %v875
          %v877 = vpop.f32.mrb[0].mxu0
          %878 = vmatprep.mubr.bf16.mxu0 0
          %879 = vmatmul.mubr.bf16.gmra.mrb[0].mxu0 %v692
          %v880 = vpop.f32.mrb[0].mxu0
          %v881 = vadd.f32 0.0, %v880
          %v882 = vpop.f32.mrb[0].mxu0
          %v883 = vpop.f32.mrb[0].mxu0
          %v884 = vadd.f32 0.0, %v883
          %v885 = vpop.f32.mrb[0].mxu0
          %886 = vmatprep.mubr.bf16.mxu0 0
          %887 = vmatmul.mubr.bf16.gmra.mrb[0].mxu0 %v695
          %v888 = vpop.f32.mrb[0].mxu0
          %v889 = vadd.f32 0.0, %v888
          %v890 = vpop.f32.mrb[0].mxu0
          %v891 = vpop.f32.mrb[0].mxu0
          %v892 = vadd.f32 0.0, %v891
          %v893 = vpop.f32.mrb[0].mxu0
          %894 = vmatprep.mubr.bf16.mxu0 0
          %895 = vmatmul.mubr.bf16.gmra.mrb[0].mxu0 %v698
          %v896 = vpop.f32.mrb[0].mxu0
          %v897 = vadd.f32 0.0, %v896
          %v898 = vpop.f32.mrb[0].mxu0
          %v899 = vpop.f32.mrb[0].mxu0
          %v900 = vadd.f32 0.0, %v899
          %v901 = vpop.f32.mrb[0].mxu0
          %902 = vmatprep.mubr.bf16.mxu0 0
          %903 = vmatmul.mubr.bf16.gmra.mrb[0].mxu0 %v701
          %v904 = vpop.f32.mrb[0].mxu0
          %v905 = vadd.f32 0.0, %v904
          %v906 = vpop.f32.mrb[0].mxu0
          %v907 = vpop.f32.mrb[0].mxu0
          %v908 = vadd.f32 0.0, %v907
          %v909 = vpop.f32.mrb[0].mxu0
          %910 = vmatprep.mubr.bf16.mxu0 0
          %911 = vmatmul.mubr.bf16.gmra.mrb[0].mxu0 %v704
          %v912 = vpop.f32.mrb[0].mxu0
          %v913 = vadd.f32 0.0, %v912
          %v914 = vpop.f32.mrb[0].mxu0
          %v915 = vpop.f32.mrb[0].mxu0
          %v916 = vadd.f32 0.0, %v915
          %v917 = vpop.f32.mrb[0].mxu0
          %918 = vmatprep.mubr.bf16.mxu0 0
          %919 = vmatmul.mubr.bf16.gmra.mrb[0].mxu0 %v707
          %v920 = vpop.f32.mrb[0].mxu0
          %v921 = vadd.f32 0.0, %v920
          %v922 = vpop.f32.mrb[0].mxu0
          %v923 = vpop.f32.mrb[0].mxu0
          %v924 = vadd.f32 0.0, %v923
          %v925 = vpop.f32.mrb[0].mxu0
          %926 = vmatprep.mubr.bf16.mxu0 0
          %927 = vmatmul.mubr.bf16.gmra.mrb[0].mxu0 %v710
          %v928 = vpop.f32.mrb[0].mxu0
          %v929 = vadd.f32 0.0, %v928
          %v930 = vpop.f32.mrb[0].mxu0
          %v931 = vpop.f32.mrb[0].mxu0
          %v932 = vadd.f32 0.0, %v931
          %v933 = vpop.f32.mrb[0].mxu0
          %934 = vmatprep.mubr.bf16.mxu0 0
          %935 = vmatmul.mubr.bf16.gmra.mrb[0].mxu0 %v713
          %v936 = vpop.f32.mrb[0].mxu0
          %v937 = vadd.f32 0.0, %v936
          %v938 = vpop.f32.mrb[0].mxu0
          %v939 = vpop.f32.mrb[0].mxu0
          %v940 = vadd.f32 0.0, %v939
          %v941 = vpop.f32.mrb[0].mxu0
          %942 = vmatprep.mubr.bf16.mxu0 0
          %943 = vmatmul.mubr.bf16.gmra.mrb[0].mxu0 %v716
          %v944 = vpop.f32.mrb[0].mxu0
          %v945 = vadd.f32 0.0, %v944
          %v946 = vpop.f32.mrb[0].mxu0
          %v947 = vpop.f32.mrb[0].mxu0
          %v948 = vadd.f32 0.0, %v947
          %v949 = vpop.f32.mrb[0].mxu0
          %950 = vmatprep.mubr.bf16.mxu0 0
          %951 = vmatmul.mubr.bf16.gmra.mrb[0].mxu0 %v719
          %v952 = vpop.f32.mrb[0].mxu0
          %v953 = vadd.f32 0.0, %v952
          %v954 = vpop.f32.mrb[0].mxu0
          %v955 = vpop.f32.mrb[0].mxu0
          %v956 = vadd.f32 0.0, %v955
          %v957 = vpop.f32.mrb[0].mxu0
          %958 = vmatprep.mubr.bf16.mxu0 0
          %959 = vmatmul.mubr.bf16.gmra.mrb[0].mxu0 %v722
          %v960 = vpop.f32.mrb[0].mxu0
          %v961 = vadd.f32 0.0, %v960
          %v962 = vpop.f32.mrb[0].mxu0
          %v963 = vpop.f32.mrb[0].mxu0
          %v964 = vadd.f32 0.0, %v963
          %v965 = vpop.f32.mrb[0].mxu0
          %966 = vmatprep.mubr.bf16.mxu0 0
          %967 = vmatmul.mubr.bf16.gmra.mrb[0].mxu0 %v725
          %v968 = vpop.f32.mrb[0].mxu0
          %v969 = vadd.f32 0.0, %v968
          %v970 = vpop.f32.mrb[0].mxu0
          %v971 = vpop.f32.mrb[0].mxu0
          %v972 = vadd.f32 0.0, %v971
          %v973 = vpop.f32.mrb[0].mxu0
          %974 = vmatprep.mubr.bf16.mxu0 0
          %975 = vmatmul.mubr.bf16.gmra.mrb[0].mxu0 %v728
          %v976 = vpop.f32.mrb[0].mxu0
          %v977 = vadd.f32 0.0, %v976
          %v978 = vpop.f32.mrb[0].mxu0
          %v979 = vpop.f32.mrb[0].mxu0
          %v980 = vadd.f32 0.0, %v979
          %v981 = vpop.f32.mrb[0].mxu0
          %982 = vmatprep.mubr.bf16.mxu0 0
          %983 = vmatmul.mubr.bf16.gmra.mrb[0].mxu0 %v731
          %v984 = vpop.f32.mrb[0].mxu0
          %v985 = vadd.f32 0.0, %v984
          %v986 = vpop.f32.mrb[0].mxu0
          %v987 = vpop.f32.mrb[0].mxu0
          %v988 = vadd.f32 0.0, %v987
          %v989 = vpop.f32.mrb[0].mxu0
          %990 = vmatprep.mubr.bf16.mxu0 0
          %991 = vmatmul.mubr.bf16.gmra.mrb[0].mxu0 %v734
          %v992 = vpop.f32.mrb[0].mxu0
          %v993 = vadd.f32 0.0, %v992
          %v994 = vpop.f32.mrb[0].mxu0
          %v995 = vpop.f32.mrb[0].mxu0
          %v996 = vadd.f32 0.0, %v995
          %v997 = vpop.f32.mrb[0].mxu0
          %998 = vmatprep.mubr.bf16.mxu0 0
          %999 = vmatmul.mubr.bf16.gmra.mrb[0].mxu0 %v737
          %v1000 = vpop.f32.mrb[0].mxu0
          %v1001 = vadd.f32 0.0, %v1000
          %v1002 = vpop.f32.mrb[0].mxu0
          %v1003 = vpop.f32.mrb[0].mxu0
          %v1004 = vadd.f32 0.0, %v1003
          %v1005 = vpop.f32.mrb[0].mxu0
          %1006 = vmatprep.mubr.bf16.mxu0 0
          %1007 = vmatmul.mubr.bf16.gmra.mrb[0].mxu0 %v740
          %v1008 = vpop.f32.mrb[0].mxu0
          %v1009 = vadd.f32 0.0, %v1008
          %v1010 = vpop.f32.mrb[0].mxu0
          %v1011 = vpop.f32.mrb[0].mxu0
          %v1012 = vadd.f32 0.0, %v1011
          %v1013 = vpop.f32.mrb[0].mxu0
          %1014 = vmatprep.mubr.bf16.mxu0 0
          %1015 = vmatmul.mubr.bf16.gmra.mrb[0].mxu0 %v743
          %v1016 = vpop.f32.mrb[0].mxu0
          %v1017 = vadd.f32 0.0, %v1016
          %v1018 = vpop.f32.mrb[0].mxu0
          %v1019 = vpop.f32.mrb[0].mxu0
          %v1020 = vadd.f32 0.0, %v1019
          %v1021 = vpop.f32.mrb[0].mxu0
          %1022 = vmatprep.mubr.bf16.mxu0 0
          %1023 = vmatmul.mubr.bf16.gmra.mrb[0].mxu0 %v746
          %v1024 = vpop.f32.mrb[0].mxu0
          %v1025 = vadd.f32 0.0, %v1024
          %v1026 = vpop.f32.mrb[0].mxu0
          %v1027 = vpop.f32.mrb[0].mxu0
          %v1028 = vadd.f32 0.0, %v1027
          %v1029 = vpop.f32.mrb[0].mxu0
          %1030 = vmatprep.mubr.bf16.mxu0 0
          %1031 = vmatmul.mubr.bf16.gmra.mrb[0].mxu0 %v749
          %v1032 = vpop.f32.mrb[0].mxu0
          %v1033 = vadd.f32 0.0, %v1032
          %v1034 = vpop.f32.mrb[0].mxu0
          %v1035 = vpop.f32.mrb[0].mxu0
          %v1036 = vadd.f32 0.0, %v1035
          %v1037 = vpop.f32.mrb[0].mxu0
          %1038 = vmatprep.mubr.bf16.mxu0 0
          %1039 = vmatmul.mubr.bf16.gmra.mrb[0].mxu0 %v752
          %v1040 = vpop.f32.mrb[0].mxu0
          %v1041 = vadd.f32 0.0, %v1040
          %v1042 = vpop.f32.mrb[0].mxu0
          %v1043 = vpop.f32.mrb[0].mxu0
          %v1044 = vadd.f32 0.0, %v1043
          %v1045 = vpop.f32.mrb[0].mxu0
          %1046 = vdwg.mxu0
          %v1047 = vld [vmem:[#allocation2] sm:$0x1]
          %v1048 = vadd.f32 %v793, %v796
          %v1049 = vadd.f32 %v1048, %v801
          %v1050 = vadd.f32 %v1049, %v804
          %v1051 = vadd.f32 %v1050, %v809
          %v1052 = vadd.f32 %v1051, %v812
          %v1053 = vadd.f32 %v1052, %v817
          %v1054 = vadd.f32 %v1053, %v820
          %v1055 = vadd.f32 %v1054, %v825
          %v1056 = vadd.f32 %v1055, %v828
          %v1057 = vadd.f32 %v1056, %v833
          %v1058 = vadd.f32 %v1057, %v836
          %v1059 = vadd.f32 %v1058, %v841
          %v1060 = vadd.f32 %v1059, %v844
          %v1061 = vadd.f32 %v1060, %v849
          %v1062 = vadd.f32 %v1061, %v852
          %v1063 = vadd.f32 %v1062, %v857
          %v1064 = vadd.f32 %v1063, %v860
          %v1065 = vadd.f32 %v1064, %v865
          %v1066 = vadd.f32 %v1065, %v868
          %v1067 = vadd.f32 %v1066, %v873
          %v1068 = vadd.f32 %v1067, %v876
          %v1069 = vadd.f32 %v1068, %v881
          %v1070 = vadd.f32 %v1069, %v884
          %v1071 = vadd.f32 %v1070, %v889
          %v1072 = vadd.f32 %v1071, %v892
          %v1073 = vadd.f32 %v1072, %v897
          %v1074 = vadd.f32 %v1073, %v900
          %v1075 = vadd.f32 %v1074, %v905
          %v1076 = vadd.f32 %v1075, %v908
          %v1077 = vadd.f32 %v1076, %v913
          %v1078 = vadd.f32 %v1077, %v916
          %v1079 = vadd.f32 %v1078, %v921
          %v1080 = vadd.f32 %v1079, %v924
          %v1081 = vadd.f32 %v1080, %v929
          %v1082 = vadd.f32 %v1081, %v932
          %v1083 = vadd.f32 %v1082, %v937
          %v1084 = vadd.f32 %v1083, %v940
          %v1085 = vadd.f32 %v1084, %v945
          %v1086 = vadd.f32 %v1085, %v948
          %v1087 = vadd.f32 %v1086, %v953
          %v1088 = vadd.f32 %v1087, %v956
          %v1089 = vadd.f32 %v1088, %v961
          %v1090 = vadd.f32 %v1089, %v964
          %v1091 = vadd.f32 %v1090, %v969
          %v1092 = vadd.f32 %v1091, %v972
          %v1093 = vadd.f32 %v1092, %v977
          %v1094 = vadd.f32 %v1093, %v980
          %v1095 = vadd.f32 %v1094, %v985
          %v1096 = vadd.f32 %v1095, %v988
          %v1097 = vadd.f32 %v1096, %v993
          %v1098 = vadd.f32 %v1097, %v996
          %v1099 = vadd.f32 %v1098, %v1001
          %v1100 = vadd.f32 %v1099, %v1004
          %v1101 = vadd.f32 %v1100, %v1009
          %v1102 = vadd.f32 %v1101, %v1012
          %v1103 = vadd.f32 %v1102, %v1017
          %v1104 = vadd.f32 %v1103, %v1020
          %v1105 = vadd.f32 %v1104, %v1025
          %v1106 = vadd.f32 %v1105, %v1028
          %v1107 = vadd.f32 %v1106, %v1033
          %v1108 = vadd.f32 %v1107, %v1036
          %v1109 = vadd.f32 %v1108, %v1041
          %v1110 = vadd.f32 %v1109, %v1044
          %v1111 = vrot.slane %v1110, 4
          %v1112 = vadd.f32 %v1110, %v1111
          %v1113 = vrot.slane %v1112, 2
          %v1114 = vadd.f32 %v1112, %v1113
          %v1115 = vrot.slane %v1114, 1
          %v1116 = vadd.f32 %v1114, %v1115
          %v1117 = vadd.f32 %v1047, %v1116
          %1118 = vst [vmem:[#allocation2] sm:$0x1] %v1117
          %v1119 = vld [vmem:[#allocation3] sm:$0x1]
          %v1120 = vmul.f32 %v793, %v793
          %v1121 = vmul.f32 %v796, %v796
          %v1122 = vmul.f32 %v801, %v801
          %v1123 = vmul.f32 %v804, %v804
          %v1124 = vmul.f32 %v809, %v809
          %v1125 = vmul.f32 %v812, %v812
          %v1126 = vmul.f32 %v817, %v817
          %v1127 = vmul.f32 %v820, %v820
          %v1128 = vmul.f32 %v825, %v825
          %v1129 = vmul.f32 %v828, %v828
          %v1130 = vmul.f32 %v833, %v833
          %v1131 = vmul.f32 %v836, %v836
          %v1132 = vmul.f32 %v841, %v841
          %v1133 = vmul.f32 %v844, %v844
          %v1134 = vmul.f32 %v849, %v849
          %v1135 = vmul.f32 %v852, %v852
          %v1136 = vmul.f32 %v857, %v857
          %v1137 = vmul.f32 %v860, %v860
          %v1138 = vmul.f32 %v865, %v865
          %v1139 = vmul.f32 %v868, %v868
          %v1140 = vmul.f32 %v873, %v873
          %v1141 = vmul.f32 %v876, %v876
          %v1142 = vmul.f32 %v881, %v881
          %v1143 = vmul.f32 %v884, %v884
          %v1144 = vmul.f32 %v889, %v889
          %v1145 = vmul.f32 %v892, %v892
          %v1146 = vmul.f32 %v897, %v897
          %v1147 = vmul.f32 %v900, %v900
          %v1148 = vmul.f32 %v905, %v905
          %v1149 = vmul.f32 %v908, %v908
          %v1150 = vmul.f32 %v913, %v913
          %v1151 = vmul.f32 %v916, %v916
          %v1152 = vmul.f32 %v921, %v921
          %v1153 = vmul.f32 %v924, %v924
          %v1154 = vmul.f32 %v929, %v929
          %v1155 = vmul.f32 %v932, %v932
          %v1156 = vmul.f32 %v937, %v937
          %v1157 = vmul.f32 %v940, %v940
          %v1158 = vmul.f32 %v945, %v945
          %v1159 = vmul.f32 %v948, %v948
          %v1160 = vmul.f32 %v953, %v953
          %v1161 = vmul.f32 %v956, %v956
          %v1162 = vmul.f32 %v961, %v961
          %v1163 = vmul.f32 %v964, %v964
          %v1164 = vmul.f32 %v969, %v969
          %v1165 = vmul.f32 %v972, %v972
          %v1166 = vmul.f32 %v977, %v977
          %v1167 = vmul.f32 %v980, %v980
          %v1168 = vmul.f32 %v985, %v985
          %v1169 = vmul.f32 %v988, %v988
          %v1170 = vmul.f32 %v993, %v993
          %v1171 = vmul.f32 %v996, %v996
          %v1172 = vmul.f32 %v1001, %v1001
          %v1173 = vmul.f32 %v1004, %v1004
          %v1174 = vmul.f32 %v1009, %v1009
          %v1175 = vmul.f32 %v1012, %v1012
          %v1176 = vmul.f32 %v1017, %v1017
          %v1177 = vmul.f32 %v1020, %v1020
          %v1178 = vmul.f32 %v1025, %v1025
          %v1179 = vmul.f32 %v1028, %v1028
          %v1180 = vmul.f32 %v1033, %v1033
          %v1181 = vmul.f32 %v1036, %v1036
          %v1182 = vmul.f32 %v1041, %v1041
          %v1183 = vmul.f32 %v1044, %v1044
          %v1184 = vadd.f32 %v1120, %v1121
          %v1185 = vadd.f32 %v1184, %v1122
          %v1186 = vadd.f32 %v1185, %v1123
          %v1187 = vadd.f32 %v1186, %v1124
          %v1188 = vadd.f32 %v1187, %v1125
          %v1189 = vadd.f32 %v1188, %v1126
          %v1190 = vadd.f32 %v1189, %v1127
          %v1191 = vadd.f32 %v1190, %v1128
          %v1192 = vadd.f32 %v1191, %v1129
          %v1193 = vadd.f32 %v1192, %v1130
          %v1194 = vadd.f32 %v1193, %v1131
          %v1195 = vadd.f32 %v1194, %v1132
          %v1196 = vadd.f32 %v1195, %v1133
          %v1197 = vadd.f32 %v1196, %v1134
          %v1198 = vadd.f32 %v1197, %v1135
          %v1199 = vadd.f32 %v1198, %v1136
          %v1200 = vadd.f32 %v1199, %v1137
          %v1201 = vadd.f32 %v1200, %v1138
          %v1202 = vadd.f32 %v1201, %v1139
          %v1203 = vadd.f32 %v1202, %v1140
          %v1204 = vadd.f32 %v1203, %v1141
          %v1205 = vadd.f32 %v1204, %v1142
          %v1206 = vadd.f32 %v1205, %v1143
          %v1207 = vadd.f32 %v1206, %v1144
          %v1208 = vadd.f32 %v1207, %v1145
          %v1209 = vadd.f32 %v1208, %v1146
          %v1210 = vadd.f32 %v1209, %v1147
          %v1211 = vadd.f32 %v1210, %v1148
          %v1212 = vadd.f32 %v1211, %v1149
          %v1213 = vadd.f32 %v1212, %v1150
          %v1214 = vadd.f32 %v1213, %v1151
          %v1215 = vadd.f32 %v1214, %v1152
          %v1216 = vadd.f32 %v1215, %v1153
          %v1217 = vadd.f32 %v1216, %v1154
          %v1218 = vadd.f32 %v1217, %v1155
          %v1219 = vadd.f32 %v1218, %v1156
          %v1220 = vadd.f32 %v1219, %v1157
          %v1221 = vadd.f32 %v1220, %v1158
          %v1222 = vadd.f32 %v1221, %v1159
          %v1223 = vadd.f32 %v1222, %v1160
          %v1224 = vadd.f32 %v1223, %v1161
          %v1225 = vadd.f32 %v1224, %v1162
          %v1226 = vadd.f32 %v1225, %v1163
          %v1227 = vadd.f32 %v1226, %v1164
          %v1228 = vadd.f32 %v1227, %v1165
          %v1229 = vadd.f32 %v1228, %v1166
          %v1230 = vadd.f32 %v1229, %v1167
          %v1231 = vadd.f32 %v1230, %v1168
          %v1232 = vadd.f32 %v1231, %v1169
          %v1233 = vadd.f32 %v1232, %v1170
          %v1234 = vadd.f32 %v1233, %v1171
          %v1235 = vadd.f32 %v1234, %v1172
          %v1236 = vadd.f32 %v1235, %v1173
          %v1237 = vadd.f32 %v1236, %v1174
          %v1238 = vadd.f32 %v1237, %v1175
          %v1239 = vadd.f32 %v1238, %v1176
          %v1240 = vadd.f32 %v1239, %v1177
          %v1241 = vadd.f32 %v1240, %v1178
          %v1242 = vadd.f32 %v1241, %v1179
          %v1243 = vadd.f32 %v1242, %v1180
          %v1244 = vadd.f32 %v1243, %v1181
          %v1245 = vadd.f32 %v1244, %v1182
          %v1246 = vadd.f32 %v1245, %v1183
          %v1247 = vrot.slane %v1246, 4
          %v1248 = vadd.f32 %v1246, %v1247
          %v1249 = vrot.slane %v1248, 2
          %v1250 = vadd.f32 %v1248, %v1249
          %v1251 = vrot.slane %v1250, 1
          %v1252 = vadd.f32 %v1250, %v1251
          %v1253 = vadd.f32 %v1119, %v1252
          %1254 = vst [vmem:[#allocation3] sm:$0x1] %v1253
          %v1255 = vpack.c.bf16 %v796, %v793
          %v1256 = vpack.c.bf16 %v804, %v801
          %v1257 = vpack.c.bf16 %v812, %v809
          %v1258 = vpack.c.bf16 %v820, %v817
          %v1259 = vpack.c.bf16 %v828, %v825
          %v1260 = vpack.c.bf16 %v836, %v833
          %v1261 = vpack.c.bf16 %v844, %v841
          %v1262 = vpack.c.bf16 %v852, %v849
          %v1263 = vpack.c.bf16 %v860, %v857
          %v1264 = vpack.c.bf16 %v868, %v865
          %v1265 = vpack.c.bf16 %v876, %v873
          %v1266 = vpack.c.bf16 %v884, %v881
          %v1267 = vpack.c.bf16 %v892, %v889
          %v1268 = vpack.c.bf16 %v900, %v897
          %v1269 = vpack.c.bf16 %v908, %v905
          %v1270 = vpack.c.bf16 %v916, %v913
          %v1271 = vpack.c.bf16 %v924, %v921
          %v1272 = vpack.c.bf16 %v932, %v929
          %v1273 = vpack.c.bf16 %v940, %v937
          %v1274 = vpack.c.bf16 %v948, %v945
          %v1275 = vpack.c.bf16 %v956, %v953
          %v1276 = vpack.c.bf16 %v964, %v961
          %v1277 = vpack.c.bf16 %v972, %v969
          %v1278 = vpack.c.bf16 %v980, %v977
          %v1279 = vpack.c.bf16 %v988, %v985
          %v1280 = vpack.c.bf16 %v996, %v993
          %v1281 = vpack.c.bf16 %v1004, %v1001
          %v1282 = vpack.c.bf16 %v1012, %v1009
          %v1283 = vpack.c.bf16 %v1020, %v1017
          %v1284 = vpack.c.bf16 %v1028, %v1025
          %v1285 = vpack.c.bf16 %v1036, %v1033
          %v1286 = vpack.c.bf16 %v1044, %v1041
          %s1287 = smul.u32 %s30, 32
          %s1288 = smul.addr %s1287, 8
          %s1289 = scalar_lea.vmem [#allocation5], %s1288
          %1290 = vst [vmem:[%s1289] sm:$0xff] %v1255
          %1291 = vst [vmem:[%s1289 + $0x8] sm:$0xff] %v1256
          %1292 = vst [vmem:[%s1289 + $0x10] sm:$0xff] %v1257
          %1293 = vst [vmem:[%s1289 + $0x18] sm:$0xff] %v1258
          %1294 = vst [vmem:[%s1289 + $0x20] sm:$0xff] %v1259
          %1295 = vst [vmem:[%s1289 + $0x28] sm:$0xff] %v1260
          %1296 = vst [vmem:[%s1289 + $0x30] sm:$0xff] %v1261
          %1297 = vst [vmem:[%s1289 + $0x38] sm:$0xff] %v1262
          %1298 = vst [vmem:[%s1289 + $0x40] sm:$0xff] %v1263
          %1299 = vst [vmem:[%s1289 + $0x48] sm:$0xff] %v1264
          %1300 = vst [vmem:[%s1289 + $0x50] sm:$0xff] %v1265
          %1301 = vst [vmem:[%s1289 + $0x58] sm:$0xff] %v1266
          %1302 = vst [vmem:[%s1289 + $0x60] sm:$0xff] %v1267
          %1303 = vst [vmem:[%s1289 + $0x68] sm:$0xff] %v1268
          %1304 = vst [vmem:[%s1289 + $0x70] sm:$0xff] %v1269
          %1305 = vst [vmem:[%s1289 + $0x78] sm:$0xff] %v1270
          %1306 = vst [vmem:[%s1289 + $0x80] sm:$0xff] %v1271
          %1307 = vst [vmem:[%s1289 + $0x88] sm:$0xff] %v1272
          %1308 = vst [vmem:[%s1289 + $0x90] sm:$0xff] %v1273
          %1309 = vst [vmem:[%s1289 + $0x98] sm:$0xff] %v1274
          %1310 = vst [vmem:[%s1289 + $0xa0] sm:$0xff] %v1275
          %1311 = vst [vmem:[%s1289 + $0xa8] sm:$0xff] %v1276
          %1312 = vst [vmem:[%s1289 + $0xb0] sm:$0xff] %v1277
          %1313 = vst [vmem:[%s1289 + $0xb8] sm:$0xff] %v1278
          %1314 = vst [vmem:[%s1289 + $0xc0] sm:$0xff] %v1279
          %1315 = vst [vmem:[%s1289 + $0xc8] sm:$0xff] %v1280
          %1316 = vst [vmem:[%s1289 + $0xd0] sm:$0xff] %v1281
          %1317 = vst [vmem:[%s1289 + $0xd8] sm:$0xff] %v1282
          %1318 = vst [vmem:[%s1289 + $0xe0] sm:$0xff] %v1283
          %1319 = vst [vmem:[%s1289 + $0xe8] sm:$0xff] %v1284
          %1320 = vst [vmem:[%s1289 + $0xf0] sm:$0xff] %v1285
          %1321 = vst [vmem:[%s1289 + $0xf8] sm:$0xff] %v1286
        $region68: #{simclr_forward.1} parent=59 // pred_fallthru
          _
        %p1322 = scmp.eq.s32.totalorder %s29, 1
        %p1323 = pnand %p1322, %p402
        %p1324 = pneg %p1323
        // Predicated region
        $region69: #{simclr_forward.1} parent=59 // pred_check
          _
        $region70: #{simclr_forward.1} parent=59 // pred_check_branch
          %1326 = sbr.rel (%p1323) target = $region72
        $region71: #{simclr_forward.1} parent=59 // pred_region
          %v1327 = vld [vmem:[#allocation2] sm:$0x1]
          %v1328 = vmul.f32 %v1327, 0.001953125
          %v1329 = vld [vmem:[#allocation3] sm:$0x1]
          %v1330 = vmul.f32 %v1329, 0.001953125
          %v1331 = vmul.f32 %v1328, %v1328
          %v1332 = vsub.f32 %v1330, %v1331
          %v1333 = vmax.f32 %v1332, 0.0
          %v1334 = vld [vmem:[%s2] sm:$0x1]
          %v1335 = vadd.f32 %v1333, 1e-05
          %v1336 = vrsqrt.pop %v1335
          %v1337 = vmul.f32 %v1334, %v1336
          %1338 = vst [vmem:[#allocation2] sm:$0x1] %v1337
          %v1339 = vld [vmem:[%s3] sm:$0x1]
          %v1340 = vmul.f32 %v1328, %v1337
          %v1341 = vsub.f32 %v1339, %v1340
          %1342 = vst [vmem:[#allocation3] sm:$0x1] %v1341
        $region72: #{simclr_forward.1} parent=59 // pred_fallthru
          _
        // Predicated region
        $region73: #{simclr_forward.1} parent=59 // pred_check
          %p1343 = pneg %p1322
        $region74: #{simclr_forward.1} parent=59 // pred_check_branch
          %1345 = sbr.rel (%p1343) target = $region76
        $region75: #{simclr_forward.1} parent=59 // pred_region
          %v1346 = vld [vmem:[#allocation2] sm:$0x1]
          %v1347 = vld [vmem:[#allocation3] sm:$0x1]
          %s1348 = smul.u32 %s30, 32
          %s1349 = smul.addr %s1348, 8
          %s1350 = scalar_lea.vmem [#allocation5], %s1349
          %v1351 = vld [vmem:[%s1350] sm:$0xff]
          %v1352 = vld [vmem:[%s1350 + $0x8] sm:$0xff]
          %v1353 = vld [vmem:[%s1350 + $0x10] sm:$0xff]
          %v1354 = vld [vmem:[%s1350 + $0x18] sm:$0xff]
          %v1355 = vld [vmem:[%s1350 + $0x20] sm:$0xff]
          %v1356 = vld [vmem:[%s1350 + $0x28] sm:$0xff]
          %v1357 = vld [vmem:[%s1350 + $0x30] sm:$0xff]
          %v1358 = vld [vmem:[%s1350 + $0x38] sm:$0xff]
          %v1359 = vld [vmem:[%s1350 + $0x40] sm:$0xff]
          %v1360 = vld [vmem:[%s1350 + $0x48] sm:$0xff]
          %v1361 = vld [vmem:[%s1350 + $0x50] sm:$0xff]
          %v1362 = vld [vmem:[%s1350 + $0x58] sm:$0xff]
          %v1363 = vld [vmem:[%s1350 + $0x60] sm:$0xff]
          %v1364 = vld [vmem:[%s1350 + $0x68] sm:$0xff]
          %v1365 = vld [vmem:[%s1350 + $0x70] sm:$0xff]
          %v1366 = vld [vmem:[%s1350 + $0x78] sm:$0xff]
          %v1367 = vld [vmem:[%s1350 + $0x80] sm:$0xff]
          %v1368 = vld [vmem:[%s1350 + $0x88] sm:$0xff]
          %v1369 = vld [vmem:[%s1350 + $0x90] sm:$0xff]
          %v1370 = vld [vmem:[%s1350 + $0x98] sm:$0xff]
          %v1371 = vld [vmem:[%s1350 + $0xa0] sm:$0xff]
          %v1372 = vld [vmem:[%s1350 + $0xa8] sm:$0xff]
          %v1373 = vld [vmem:[%s1350 + $0xb0] sm:$0xff]
          %v1374 = vld [vmem:[%s1350 + $0xb8] sm:$0xff]
          %v1375 = vld [vmem:[%s1350 + $0xc0] sm:$0xff]
          %v1376 = vld [vmem:[%s1350 + $0xc8] sm:$0xff]
          %v1377 = vld [vmem:[%s1350 + $0xd0] sm:$0xff]
          %v1378 = vld [vmem:[%s1350 + $0xd8] sm:$0xff]
          %v1379 = vld [vmem:[%s1350 + $0xe0] sm:$0xff]
          %v1380 = vld [vmem:[%s1350 + $0xe8] sm:$0xff]
          %v1381 = vld [vmem:[%s1350 + $0xf0] sm:$0xff]
          %v1382 = vld [vmem:[%s1350 + $0xf8] sm:$0xff]
          %v1383 = vunpack.c.l.bf16 %v1351
          %v1384 = vunpack.c.h.bf16 %v1351
          %v1385 = vunpack.c.l.bf16 %v1352
          %v1386 = vunpack.c.h.bf16 %v1352
          %v1387 = vunpack.c.l.bf16 %v1353
          %v1388 = vunpack.c.h.bf16 %v1353
          %v1389 = vunpack.c.l.bf16 %v1354
          %v1390 = vunpack.c.h.bf16 %v1354
          %v1391 = vunpack.c.l.bf16 %v1355
          %v1392 = vunpack.c.h.bf16 %v1355
          %v1393 = vunpack.c.l.bf16 %v1356
          %v1394 = vunpack.c.h.bf16 %v1356
          %v1395 = vunpack.c.l.bf16 %v1357
          %v1396 = vunpack.c.h.bf16 %v1357
          %v1397 = vunpack.c.l.bf16 %v1358
          %v1398 = vunpack.c.h.bf16 %v1358
          %v1399 = vunpack.c.l.bf16 %v1359
          %v1400 = vunpack.c.h.bf16 %v1359
          %v1401 = vunpack.c.l.bf16 %v1360
          %v1402 = vunpack.c.h.bf16 %v1360
          %v1403 = vunpack.c.l.bf16 %v1361
          %v1404 = vunpack.c.h.bf16 %v1361
          %v1405 = vunpack.c.l.bf16 %v1362
          %v1406 = vunpack.c.h.bf16 %v1362
          %v1407 = vunpack.c.l.bf16 %v1363
          %v1408 = vunpack.c.h.bf16 %v1363
          %v1409 = vunpack.c.l.bf16 %v1364
          %v1410 = vunpack.c.h.bf16 %v1364
          %v1411 = vunpack.c.l.bf16 %v1365
          %v1412 = vunpack.c.h.bf16 %v1365
          %v1413 = vunpack.c.l.bf16 %v1366
          %v1414 = vunpack.c.h.bf16 %v1366
          %v1415 = vunpack.c.l.bf16 %v1367
          %v1416 = vunpack.c.h.bf16 %v1367
          %v1417 = vunpack.c.l.bf16 %v1368
          %v1418 = vunpack.c.h.bf16 %v1368
          %v1419 = vunpack.c.l.bf16 %v1369
          %v1420 = vunpack.c.h.bf16 %v1369
          %v1421 = vunpack.c.l.bf16 %v1370
          %v1422 = vunpack.c.h.bf16 %v1370
          %v1423 = vunpack.c.l.bf16 %v1371
          %v1424 = vunpack.c.h.bf16 %v1371
          %v1425 = vunpack.c.l.bf16 %v1372
          %v1426 = vunpack.c.h.bf16 %v1372
          %v1427 = vunpack.c.l.bf16 %v1373
          %v1428 = vunpack.c.h.bf16 %v1373
          %v1429 = vunpack.c.l.bf16 %v1374
          %v1430 = vunpack.c.h.bf16 %v1374
          %v1431 = vunpack.c.l.bf16 %v1375
          %v1432 = vunpack.c.h.bf16 %v1375
          %v1433 = vunpack.c.l.bf16 %v1376
          %v1434 = vunpack.c.h.bf16 %v1376
          %v1435 = vunpack.c.l.bf16 %v1377
          %v1436 = vunpack.c.h.bf16 %v1377
          %v1437 = vunpack.c.l.bf16 %v1378
          %v1438 = vunpack.c.h.bf16 %v1378
          %v1439 = vunpack.c.l.bf16 %v1379
          %v1440 = vunpack.c.h.bf16 %v1379
          %v1441 = vunpack.c.l.bf16 %v1380
          %v1442 = vunpack.c.h.bf16 %v1380
          %v1443 = vunpack.c.l.bf16 %v1381
          %v1444 = vunpack.c.h.bf16 %v1381
          %v1445 = vunpack.c.l.bf16 %v1382
          %v1446 = vunpack.c.h.bf16 %v1382
          %v1448 = vlaneseq
          %v1449 = vshrl.u32 %v1448, 7
          %v1450 = vsub.s32 0, %v1449
          %v1451 = vrot.slane %v1346, %v1450
          %v1453 = vmul.f32 %v1383, %v1451
          %v1454 = vmul.f32 %v1384, %v1451
          %v1455 = vmul.f32 %v1385, %v1451
          %v1456 = vmul.f32 %v1386, %v1451
          %v1457 = vmul.f32 %v1387, %v1451
          %v1458 = vmul.f32 %v1388, %v1451
          %v1459 = vmul.f32 %v1389, %v1451
          %v1460 = vmul.f32 %v1390, %v1451
          %v1461 = vmul.f32 %v1391, %v1451
          %v1462 = vmul.f32 %v1392, %v1451
          %v1463 = vmul.f32 %v1393, %v1451
          %v1464 = vmul.f32 %v1394, %v1451
          %v1465 = vmul.f32 %v1395, %v1451
          %v1466 = vmul.f32 %v1396, %v1451
          %v1467 = vmul.f32 %v1397, %v1451
          %v1468 = vmul.f32 %v1398, %v1451
          %v1469 = vmul.f32 %v1399, %v1451
          %v1470 = vmul.f32 %v1400, %v1451
          %v1471 = vmul.f32 %v1401, %v1451
          %v1472 = vmul.f32 %v1402, %v1451
          %v1473 = vmul.f32 %v1403, %v1451
          %v1474 = vmul.f32 %v1404, %v1451
          %v1475 = vmul.f32 %v1405, %v1451
          %v1476 = vmul.f32 %v1406, %v1451
          %v1477 = vmul.f32 %v1407, %v1451
          %v1478 = vmul.f32 %v1408, %v1451
          %v1479 = vmul.f32 %v1409, %v1451
          %v1480 = vmul.f32 %v1410, %v1451
          %v1481 = vmul.f32 %v1411, %v1451
          %v1482 = vmul.f32 %v1412, %v1451
          %v1483 = vmul.f32 %v1413, %v1451
          %v1484 = vmul.f32 %v1414, %v1451
          %v1485 = vmul.f32 %v1415, %v1451
          %v1486 = vmul.f32 %v1416, %v1451
          %v1487 = vmul.f32 %v1417, %v1451
          %v1488 = vmul.f32 %v1418, %v1451
          %v1489 = vmul.f32 %v1419, %v1451
          %v1490 = vmul.f32 %v1420, %v1451
          %v1491 = vmul.f32 %v1421, %v1451
          %v1492 = vmul.f32 %v1422, %v1451
          %v1493 = vmul.f32 %v1423, %v1451
          %v1494 = vmul.f32 %v1424, %v1451
          %v1495 = vmul.f32 %v1425, %v1451
          %v1496 = vmul.f32 %v1426, %v1451
          %v1497 = vmul.f32 %v1427, %v1451
          %v1498 = vmul.f32 %v1428, %v1451
          %v1499 = vmul.f32 %v1429, %v1451
          %v1500 = vmul.f32 %v1430, %v1451
          %v1501 = vmul.f32 %v1431, %v1451
          %v1502 = vmul.f32 %v1432, %v1451
          %v1503 = vmul.f32 %v1433, %v1451
          %v1504 = vmul.f32 %v1434, %v1451
          %v1505 = vmul.f32 %v1435, %v1451
          %v1506 = vmul.f32 %v1436, %v1451
          %v1507 = vmul.f32 %v1437, %v1451
          %v1508 = vmul.f32 %v1438, %v1451
          %v1509 = vmul.f32 %v1439, %v1451
          %v1510 = vmul.f32 %v1440, %v1451
          %v1511 = vmul.f32 %v1441, %v1451
          %v1512 = vmul.f32 %v1442, %v1451
          %v1513 = vmul.f32 %v1443, %v1451
          %v1514 = vmul.f32 %v1444, %v1451
          %v1515 = vmul.f32 %v1445, %v1451
          %v1516 = vmul.f32 %v1446, %v1451
          %v1518 = vlaneseq
          %v1519 = vshrl.u32 %v1518, 7
          %v1520 = vsub.s32 0, %v1519
          %v1521 = vrot.slane %v1347, %v1520
          %v1523 = vadd.f32 %v1453, %v1521
          %v1524 = vadd.f32 %v1454, %v1521
          %v1525 = vadd.f32 %v1455, %v1521
          %v1526 = vadd.f32 %v1456, %v1521
          %v1527 = vadd.f32 %v1457, %v1521
          %v1528 = vadd.f32 %v1458, %v1521
          %v1529 = vadd.f32 %v1459, %v1521
          %v1530 = vadd.f32 %v1460, %v1521
          %v1531 = vadd.f32 %v1461, %v1521
          %v1532 = vadd.f32 %v1462, %v1521
          %v1533 = vadd.f32 %v1463, %v1521
          %v1534 = vadd.f32 %v1464, %v1521
          %v1535 = vadd.f32 %v1465, %v1521
          %v1536 = vadd.f32 %v1466, %v1521
          %v1537 = vadd.f32 %v1467, %v1521
          %v1538 = vadd.f32 %v1468, %v1521
          %v1539 = vadd.f32 %v1469, %v1521
          %v1540 = vadd.f32 %v1470, %v1521
          %v1541 = vadd.f32 %v1471, %v1521
          %v1542 = vadd.f32 %v1472, %v1521
          %v1543 = vadd.f32 %v1473, %v1521
          %v1544 = vadd.f32 %v1474, %v1521
          %v1545 = vadd.f32 %v1475, %v1521
          %v1546 = vadd.f32 %v1476, %v1521
          %v1547 = vadd.f32 %v1477, %v1521
          %v1548 = vadd.f32 %v1478, %v1521
          %v1549 = vadd.f32 %v1479, %v1521
          %v1550 = vadd.f32 %v1480, %v1521
          %v1551 = vadd.f32 %v1481, %v1521
          %v1552 = vadd.f32 %v1482, %v1521
          %v1553 = vadd.f32 %v1483, %v1521
          %v1554 = vadd.f32 %v1484, %v1521
          %v1555 = vadd.f32 %v1485, %v1521
          %v1556 = vadd.f32 %v1486, %v1521
          %v1557 = vadd.f32 %v1487, %v1521
          %v1558 = vadd.f32 %v1488, %v1521
          %v1559 = vadd.f32 %v1489, %v1521
          %v1560 = vadd.f32 %v1490, %v1521
          %v1561 = vadd.f32 %v1491, %v1521
          %v1562 = vadd.f32 %v1492, %v1521
          %v1563 = vadd.f32 %v1493, %v1521
          %v1564 = vadd.f32 %v1494, %v1521
          %v1565 = vadd.f32 %v1495, %v1521
          %v1566 = vadd.f32 %v1496, %v1521
          %v1567 = vadd.f32 %v1497, %v1521
          %v1568 = vadd.f32 %v1498, %v1521
          %v1569 = vadd.f32 %v1499, %v1521
          %v1570 = vadd.f32 %v1500, %v1521
          %v1571 = vadd.f32 %v1501, %v1521
          %v1572 = vadd.f32 %v1502, %v1521
          %v1573 = vadd.f32 %v1503, %v1521
          %v1574 = vadd.f32 %v1504, %v1521
          %v1575 = vadd.f32 %v1505, %v1521
          %v1576 = vadd.f32 %v1506, %v1521
          %v1577 = vadd.f32 %v1507, %v1521
          %v1578 = vadd.f32 %v1508, %v1521
          %v1579 = vadd.f32 %v1509, %v1521
          %v1580 = vadd.f32 %v1510, %v1521
          %v1581 = vadd.f32 %v1511, %v1521
          %v1582 = vadd.f32 %v1512, %v1521
          %v1583 = vadd.f32 %v1513, %v1521
          %v1584 = vadd.f32 %v1514, %v1521
          %v1585 = vadd.f32 %v1515, %v1521
          %v1586 = vadd.f32 %v1516, %v1521
          %v1587 = vmax.f32 %v1523, 0.0
          %v1588 = vmax.f32 %v1524, 0.0
          %v1589 = vmax.f32 %v1525, 0.0
          %v1590 = vmax.f32 %v1526, 0.0
          %v1591 = vmax.f32 %v1527, 0.0
          %v1592 = vmax.f32 %v1528, 0.0
          %v1593 = vmax.f32 %v1529, 0.0
          %v1594 = vmax.f32 %v1530, 0.0
          %v1595 = vmax.f32 %v1531, 0.0
          %v1596 = vmax.f32 %v1532, 0.0
          %v1597 = vmax.f32 %v1533, 0.0
          %v1598 = vmax.f32 %v1534, 0.0
          %v1599 = vmax.f32 %v1535, 0.0
          %v1600 = vmax.f32 %v1536, 0.0
          %v1601 = vmax.f32 %v1537, 0.0
          %v1602 = vmax.f32 %v1538, 0.0
          %v1603 = vmax.f32 %v1539, 0.0
          %v1604 = vmax.f32 %v1540, 0.0
          %v1605 = vmax.f32 %v1541, 0.0
          %v1606 = vmax.f32 %v1542, 0.0
          %v1607 = vmax.f32 %v1543, 0.0
          %v1608 = vmax.f32 %v1544, 0.0
          %v1609 = vmax.f32 %v1545, 0.0
          %v1610 = vmax.f32 %v1546, 0.0
          %v1611 = vmax.f32 %v1547, 0.0
          %v1612 = vmax.f32 %v1548, 0.0
          %v1613 = vmax.f32 %v1549, 0.0
          %v1614 = vmax.f32 %v1550, 0.0
          %v1615 = vmax.f32 %v1551, 0.0
          %v1616 = vmax.f32 %v1552, 0.0
          %v1617 = vmax.f32 %v1553, 0.0
          %v1618 = vmax.f32 %v1554, 0.0
          %v1619 = vmax.f32 %v1555, 0.0
          %v1620 = vmax.f32 %v1556, 0.0
          %v1621 = vmax.f32 %v1557, 0.0
          %v1622 = vmax.f32 %v1558, 0.0
          %v1623 = vmax.f32 %v1559, 0.0
          %v1624 = vmax.f32 %v1560, 0.0
          %v1625 = vmax.f32 %v1561, 0.0
          %v1626 = vmax.f32 %v1562, 0.0
          %v1627 = vmax.f32 %v1563, 0.0
          %v1628 = vmax.f32 %v1564, 0.0
          %v1629 = vmax.f32 %v1565, 0.0
          %v1630 = vmax.f32 %v1566, 0.0
          %v1631 = vmax.f32 %v1567, 0.0
          %v1632 = vmax.f32 %v1568, 0.0
          %v1633 = vmax.f32 %v1569, 0.0
          %v1634 = vmax.f32 %v1570, 0.0
          %v1635 = vmax.f32 %v1571, 0.0
          %v1636 = vmax.f32 %v1572, 0.0
          %v1637 = vmax.f32 %v1573, 0.0
          %v1638 = vmax.f32 %v1574, 0.0
          %v1639 = vmax.f32 %v1575, 0.0
          %v1640 = vmax.f32 %v1576, 0.0
          %v1641 = vmax.f32 %v1577, 0.0
          %v1642 = vmax.f32 %v1578, 0.0
          %v1643 = vmax.f32 %v1579, 0.0
          %v1644 = vmax.f32 %v1580, 0.0
          %v1645 = vmax.f32 %v1581, 0.0
          %v1646 = vmax.f32 %v1582, 0.0
          %v1647 = vmax.f32 %v1583, 0.0
          %v1648 = vmax.f32 %v1584, 0.0
          %v1649 = vmax.f32 %v1585, 0.0
          %v1650 = vmax.f32 %v1586, 0.0
          %v1651 = vadd.f32 %v1587, %v1588
          %v1652 = vadd.f32 %v1651, %v1589
          %v1653 = vadd.f32 %v1652, %v1590
          %v1654 = vadd.f32 %v1653, %v1591
          %v1655 = vadd.f32 %v1654, %v1592
          %v1656 = vadd.f32 %v1655, %v1593
          %v1657 = vadd.f32 %v1656, %v1594
          %v1658 = vadd.f32 %v1657, %v1595
          %v1659 = vadd.f32 %v1658, %v1596
          %v1660 = vadd.f32 %v1659, %v1597
          %v1661 = vadd.f32 %v1660, %v1598
          %v1662 = vadd.f32 %v1661, %v1599
          %v1663 = vadd.f32 %v1662, %v1600
          %v1664 = vadd.f32 %v1663, %v1601
          %v1665 = vadd.f32 %v1664, %v1602
          %v1666 = vadd.f32 %v1665, %v1603
          %v1667 = vadd.f32 %v1666, %v1604
          %v1668 = vadd.f32 %v1667, %v1605
          %v1669 = vadd.f32 %v1668, %v1606
          %v1670 = vadd.f32 %v1669, %v1607
          %v1671 = vadd.f32 %v1670, %v1608
          %v1672 = vadd.f32 %v1671, %v1609
          %v1673 = vadd.f32 %v1672, %v1610
          %v1674 = vadd.f32 %v1673, %v1611
          %v1675 = vadd.f32 %v1674, %v1612
          %v1676 = vadd.f32 %v1675, %v1613
          %v1677 = vadd.f32 %v1676, %v1614
          %v1678 = vadd.f32 %v1677, %v1615
          %v1679 = vadd.f32 %v1678, %v1616
          %v1680 = vadd.f32 %v1679, %v1617
          %v1681 = vadd.f32 %v1680, %v1618
          %v1682 = vrot.slane %v1681, 4
          %v1683 = vadd.f32 %v1681, %v1682
          %v1684 = vrot.slane %v1683, 2
          %v1685 = vadd.f32 %v1683, %v1684
          %v1686 = vrot.slane %v1685, 1
          %v1687 = vadd.f32 %v1685, %v1686
          %v1688 = vadd.f32 %v1619, %v1620
          %v1689 = vadd.f32 %v1688, %v1621
          %v1690 = vadd.f32 %v1689, %v1622
          %v1691 = vadd.f32 %v1690, %v1623
          %v1692 = vadd.f32 %v1691, %v1624
          %v1693 = vadd.f32 %v1692, %v1625
          %v1694 = vadd.f32 %v1693, %v1626
          %v1695 = vadd.f32 %v1694, %v1627
          %v1696 = vadd.f32 %v1695, %v1628
          %v1697 = vadd.f32 %v1696, %v1629
          %v1698 = vadd.f32 %v1697, %v1630
          %v1699 = vadd.f32 %v1698, %v1631
          %v1700 = vadd.f32 %v1699, %v1632
          %v1701 = vadd.f32 %v1700, %v1633
          %v1702 = vadd.f32 %v1701, %v1634
          %v1703 = vadd.f32 %v1702, %v1635
          %v1704 = vadd.f32 %v1703, %v1636
          %v1705 = vadd.f32 %v1704, %v1637
          %v1706 = vadd.f32 %v1705, %v1638
          %v1707 = vadd.f32 %v1706, %v1639
          %v1708 = vadd.f32 %v1707, %v1640
          %v1709 = vadd.f32 %v1708, %v1641
          %v1710 = vadd.f32 %v1709, %v1642
          %v1711 = vadd.f32 %v1710, %v1643
          %v1712 = vadd.f32 %v1711, %v1644
          %v1713 = vadd.f32 %v1712, %v1645
          %v1714 = vadd.f32 %v1713, %v1646
          %v1715 = vadd.f32 %v1714, %v1647
          %v1716 = vadd.f32 %v1715, %v1648
          %v1717 = vadd.f32 %v1716, %v1649
          %v1718 = vadd.f32 %v1717, %v1650
          %v1719 = vrot.slane %v1718, 4
          %v1720 = vadd.f32 %v1718, %v1719
          %v1721 = vrot.slane %v1720, 2
          %v1722 = vadd.f32 %v1720, %v1721
          %v1723 = vrot.slane %v1722, 1
          %v1724 = vadd.f32 %v1722, %v1723
          %vm1725 = vcmask 1040384
          %v1726 = vsel %vm1725, %v1687, %v1724
          %v1727 = vmul.f32 %v1726, 0.00390625
          %s1728 = smul.u32 %s30, 2
          %s1729 = scalar_lea.vmem [#allocation4], %s1728
          %1730 = vst [vmem:[%s1729] sm:$0x3] %v1727
        $region76: #{simclr_forward.1} parent=59 // pred_fallthru
          _
        // Predicated region
        $region77: #{simclr_forward.1} parent=59 // pred_check
          _
        $region78: #{simclr_forward.1} parent=59 // pred_check_branch
          %1732 = sbr.rel (%p1323) target = $region80
        $region79: #{simclr_forward.1} parent=59 // pred_region
          %v1733 = vld [vmem:[#allocation4] sm:$0x3]
          %v1734 = vpack.c.bf16 %v1733, %v1733
          %v1735 = vld [vmem:[%s4] sm:$0xf]
          %v1736 = vld [vmem:[%s4 + $0x4] sm:$0xf]
          %v1737 = vld [vmem:[%s4 + $0x8] sm:$0xf]
          %v1738 = vld [vmem:[%s4 + $0xc] sm:$0xf]
          %v1739 = vld [vmem:[%s4 + $0x10] sm:$0xf]
          %v1740 = vld [vmem:[%s4 + $0x14] sm:$0xf]
          %v1741 = vld [vmem:[%s4 + $0x18] sm:$0xf]
          %v1742 = vld [vmem:[%s4 + $0x1c] sm:$0xf]
          %v1743 = vld [vmem:[%s4 + $0x20] sm:$0xf]
          %v1744 = vld [vmem:[%s4 + $0x24] sm:$0xf]
          %v1745 = vld [vmem:[%s4 + $0x28] sm:$0xf]
          %v1746 = vld [vmem:[%s4 + $0x2c] sm:$0xf]
          %v1747 = vld [vmem:[%s4 + $0x30] sm:$0xf]
          %v1748 = vld [vmem:[%s4 + $0x34] sm:$0xf]
          %v1749 = vld [vmem:[%s4 + $0x38] sm:$0xf]
          %v1750 = vld [vmem:[%s4 + $0x3c] sm:$0xf]
          %v1751 = vld [vmem:[%s5] sm:$0x1]
          %v1753 = vlaneseq
          %v1754 = vshrl.u32 %v1753, 7
          %v1755 = vsub.s32 0, %v1754
          %v1756 = vrot.slane %v1751, %v1755
          %v1774 = vunpack.c.l.b16 %v1735
          %v1775 = vunpack.c.l.b16 %v1736
          %v1776 = vunpack.c.l.b16 %v1737
          %v1777 = vunpack.c.l.b16 %v1738
          %v1778 = vunpack.c.l.b16 %v1739
          %v1779 = vunpack.c.l.b16 %v1740
          %v1780 = vunpack.c.l.b16 %v1741
          %v1781 = vunpack.c.l.b16 %v1742
          %v1782 = vunpack.c.l.b16 %v1743
          %v1783 = vunpack.c.l.b16 %v1744
          %v1784 = vunpack.c.l.b16 %v1745
          %v1785 = vunpack.c.l.b16 %v1746
          %v1786 = vunpack.c.l.b16 %v1747
          %v1787 = vunpack.c.l.b16 %v1748
          %v1788 = vunpack.c.l.b16 %v1749
          %v1789 = vunpack.c.l.b16 %v1750
          %v1790 = vpack.c.b16 %v1775, %v1774
          %v1791 = vpack.c.b16 %v1777, %v1776
          %v1792 = vpack.c.b16 %v1779, %v1778
          %v1793 = vpack.c.b16 %v1781, %v1780
          %v1794 = vpack.c.b16 %v1783, %v1782
          %v1795 = vpack.c.b16 %v1785, %v1784
          %v1796 = vpack.c.b16 %v1787, %v1786
          %v1797 = vpack.c.b16 %v1789, %v1788
          %1806 = vmatprep.subr.bf16.mxu0 0
          %1807 = vmatpush1.bf16.msra.mxu0 %v1790
          %1808 = vmatprep.subr.bf16.mxu0 0
          %1809 = vmatpush1.bf16.msra.mxu0 %v1791
          %1810 = vmatprep.subr.bf16.mxu0 0
          %1811 = vmatpush1.bf16.msra.mxu0 %v1792
          %1812 = vmatprep.subr.bf16.mxu0 0
          %1813 = vmatpush1.bf16.msra.mxu0 %v1793
          %1814 = vmatprep.subr.bf16.mxu0 0
          %1815 = vmatpush1.bf16.msra.mxu0 %v1794
          %1816 = vmatprep.subr.bf16.mxu0 0
          %1817 = vmatpush1.bf16.msra.mxu0 %v1795
          %1818 = vmatprep.subr.bf16.mxu0 0
          %1819 = vmatpush1.bf16.msra.mxu0 %v1796
          %1820 = vmatprep.subr.bf16.mxu0 0
          %1821 = vmatpush1.bf16.msra.mxu0 %v1797
          %1822 = vmatprep.subr.bf16.mxu0 0
          %1823 = vmatpush1.bf16.msra.mxu0 0
          %1824 = vmatprep.subr.bf16.mxu0 0
          %1825 = vmatpush1.bf16.msra.mxu0 0
          %1826 = vmatprep.subr.bf16.mxu0 0
          %1827 = vmatpush1.bf16.msra.mxu0 0
          %1828 = vmatprep.subr.bf16.mxu0 0
          %1829 = vmatpush1.bf16.msra.mxu0 0
          %1830 = vmatprep.subr.bf16.mxu0 0
          %1831 = vmatpush1.bf16.msra.mxu0 0
          %1832 = vmatprep.subr.bf16.mxu0 0
          %1833 = vmatpush1.bf16.msra.mxu0 0
          %1834 = vmatprep.subr.bf16.mxu0 0
          %1835 = vmatpush1.bf16.msra.mxu0 0
          %1836 = vmatprep.subr.bf16.mxu0 0
          %1837 = vmatpush1.bf16.msra.mxu0 0
          %1838 = vmatprep.mubr.bf16.mxu0 0
          %1839 = vmatmul.mubr.bf16.gmra.mrb[0].mxu0 %v1734
          %v1840 = vpop.f32.mrb[0].mxu0
          %v1841 = vadd.f32 %v1756, %v1840
          %v1842 = vpop.f32.mrb[0].mxu0
          %v1843 = vpop.f32.mrb[0].mxu0
          %v1844 = vpop.f32.mrb[0].mxu0
          %1845 = vdwg.mxu0
          %vm1846 = vcmask 1041408
          %v1847 = vsel %vm1846, %v1841, 0.0
          %v1848 = vrot.slane %v1847, 4
          %v1849 = vadd.f32 %v1847, %v1848
          %v1850 = vrot.slane %v1849, 2
          %v1851 = vadd.f32 %v1849, %v1850
          %v1852 = vrot.slane %v1851, 1
          %v1853 = vadd.f32 %v1851, %v1852
          %v1854 = vrcp.pop 2.0
          %v1855 = vmul.f32 %v1853, %v1854
          %v1856 = vmul.f32 %v1841, %v1841
          %v1857 = vsel %vm1846, %v1856, 0.0
          %v1858 = vrot.slane %v1857, 4
          %v1859 = vadd.f32 %v1857, %v1858
          %v1860 = vrot.slane %v1859, 2
          %v1861 = vadd.f32 %v1859, %v1860
          %v1862 = vrot.slane %v1861, 1
          %v1863 = vadd.f32 %v1861, %v1862
          %v1864 = vmul.f32 %v1863, %v1854
          %v1865 = vmul.f32 %v1855, %v1855
          %v1866 = vsub.f32 %v1864, %v1865
          %v1867 = vmax.f32 %v1866, 0.0
          %v1868 = vsub.f32 %v1841, %v1855
          %v1869 = vadd.f32 %v1867, 1e-05
          %v1870 = vrsqrt.pop %v1869
          %v1871 = vmul.f32 %v1868, %v1870
          %v1872 = vld [vmem:[%s6] sm:$0x1]
          %v1874 = vlaneseq
          %v1875 = vshrl.u32 %v1874, 7
          %v1876 = vsub.s32 0, %v1875
          %v1877 = vrot.slane %v1872, %v1876
          %v1879 = vmul.f32 %v1871, %v1877
          %v1880 = vld [vmem:[%s7] sm:$0x1]
          %v1882 = vlaneseq
          %v1883 = vshrl.u32 %v1882, 7
          %v1884 = vsub.s32 0, %v1883
          %v1885 = vrot.slane %v1880, %v1884
          %v1887 = vadd.f32 %v1879, %v1885
          %v1888 = vmax.f32 %v1887, 0.0
          %v1889 = vpack.c.bf16 %v1888, %v1888
          %s1890 = scalar_lea.vmem %s4, 64
          %v1891 = vld [vmem:[%s1890] sm:$0xf]
          %v1892 = vld [vmem:[%s1890 + $0x4] sm:$0xf]
          %v1893 = vld [vmem:[%s1890 + $0x8] sm:$0xf]
          %v1894 = vld [vmem:[%s1890 + $0xc] sm:$0xf]
          %v1895 = vld [vmem:[%s1890 + $0x10] sm:$0xf]
          %v1896 = vld [vmem:[%s1890 + $0x14] sm:$0xf]
          %v1897 = vld [vmem:[%s1890 + $0x18] sm:$0xf]
          %v1898 = vld [vmem:[%s1890 + $0x1c] sm:$0xf]
          %v1899 = vld [vmem:[%s1890 + $0x20] sm:$0xf]
          %v1900 = vld [vmem:[%s1890 + $0x24] sm:$0xf]
          %v1901 = vld [vmem:[%s1890 + $0x28] sm:$0xf]
          %v1902 = vld [vmem:[%s1890 + $0x2c] sm:$0xf]
          %v1903 = vld [vmem:[%s1890 + $0x30] sm:$0xf]
          %v1904 = vld [vmem:[%s1890 + $0x34] sm:$0xf]
          %v1905 = vld [vmem:[%s1890 + $0x38] sm:$0xf]
          %v1906 = vld [vmem:[%s1890 + $0x3c] sm:$0xf]
          %s1907 = scalar_lea.vmem %s5, 1
          %v1908 = vld [vmem:[%s1907] sm:$0x1]
          %v1910 = vlaneseq
          %v1911 = vshrl.u32 %v1910, 7
          %v1912 = vsub.s32 0, %v1911
          %v1913 = vrot.slane %v1908, %v1912
          %v1931 = vunpack.c.l.b16 %v1891
          %v1932 = vunpack.c.l.b16 %v1892
          %v1933 = vunpack.c.l.b16 %v1893
          %v1934 = vunpack.c.l.b16 %v1894
          %v1935 = vunpack.c.l.b16 %v1895
          %v1936 = vunpack.c.l.b16 %v1896
          %v1937 = vunpack.c.l.b16 %v1897
          %v1938 = vunpack.c.l.b16 %v1898
          %v1939 = vunpack.c.l.b16 %v1899
          %v1940 = vunpack.c.l.b16 %v1900
          %v1941 = vunpack.c.l.b16 %v1901
          %v1942 = vunpack.c.l.b16 %v1902
          %v1943 = vunpack.c.l.b16 %v1903
          %v1944 = vunpack.c.l.b16 %v1904
          %v1945 = vunpack.c.l.b16 %v1905
          %v1946 = vunpack.c.l.b16 %v1906
          %v1947 = vpack.c.b16 %v1932, %v1931
          %v1948 = vpack.c.b16 %v1934, %v1933
          %v1949 = vpack.c.b16 %v1936, %v1935
          %v1950 = vpack.c.b16 %v1938, %v1937
          %v1951 = vpack.c.b16 %v1940, %v1939
          %v1952 = vpack.c.b16 %v1942, %v1941
          %v1953 = vpack.c.b16 %v1944, %v1943
          %v1954 = vpack.c.b16 %v1946, %v1945
          %1963 = vmatprep.subr.bf16.mxu0 0
          %1964 = vmatpush1.bf16.msra.mxu0 %v1947
          %1965 = vmatprep.subr.bf16.mxu0 0
          %1966 = vmatpush1.bf16.msra.mxu0 %v1948
          %1967 = vmatprep.subr.bf16.mxu0 0
          %1968 = vmatpush1.bf16.msra.mxu0 %v1949
          %1969 = vmatprep.subr.bf16.mxu0 0
          %1970 = vmatpush1.bf16.msra.mxu0 %v1950
          %1971 = vmatprep.subr.bf16.mxu0 0
          %1972 = vmatpush1.bf16.msra.mxu0 %v1951
          %1973 = vmatprep.subr.bf16.mxu0 0
          %1974 = vmatpush1.bf16.msra.mxu0 %v1952
          %1975 = vmatprep.subr.bf16.mxu0 0
          %1976 = vmatpush1.bf16.msra.mxu0 %v1953
          %1977 = vmatprep.subr.bf16.mxu0 0
          %1978 = vmatpush1.bf16.msra.mxu0 %v1954
          %1979 = vmatprep.subr.bf16.mxu0 0
          %1980 = vmatpush1.bf16.msra.mxu0 0
          %1981 = vmatprep.subr.bf16.mxu0 0
          %1982 = vmatpush1.bf16.msra.mxu0 0
          %1983 = vmatprep.subr.bf16.mxu0 0
          %1984 = vmatpush1.bf16.msra.mxu0 0
          %1985 = vmatprep.subr.bf16.mxu0 0
          %1986 = vmatpush1.bf16.msra.mxu0 0
          %1987 = vmatprep.subr.bf16.mxu0 0
          %1988 = vmatpush1.bf16.msra.mxu0 0
          %1989 = vmatprep.subr.bf16.mxu0 0
          %1990 = vmatpush1.bf16.msra.mxu0 0
          %1991 = vmatprep.subr.bf16.mxu0 0
          %1992 = vmatpush1.bf16.msra.mxu0 0
          %1993 = vmatprep.subr.bf16.mxu0 0
          %1994 = vmatpush1.bf16.msra.mxu0 0
          %1995 = vmatprep.mubr.bf16.mxu0 0
          %1996 = vmatmul.mubr.bf16.gmra.mrb[0].mxu0 %v1889
          %v1997 = vpop.f32.mrb[0].mxu0
          %v1998 = vadd.f32 %v1913, %v1997
          %v1999 = vpop.f32.mrb[0].mxu0
          %v2000 = vpop.f32.mrb[0].mxu0
          %v2001 = vpop.f32.mrb[0].mxu0
          %2002 = vdwg.mxu0
          %v2003 = vsel %vm1846, %v1998, 0.0
          %v2004 = vrot.slane %v2003, 4
          %v2005 = vadd.f32 %v2003, %v2004
          %v2006 = vrot.slane %v2005, 2
          %v2007 = vadd.f32 %v2005, %v2006
          %v2008 = vrot.slane %v2007, 1
          %v2009 = vadd.f32 %v2007, %v2008
          %v2010 = vmul.f32 %v2009, %v1854
          %v2011 = vmul.f32 %v1998, %v1998
          %v2012 = vsel %vm1846, %v2011, 0.0
          %v2013 = vrot.slane %v2012, 4
          %v2014 = vadd.f32 %v2012, %v2013
          %v2015 = vrot.slane %v2014, 2
          %v2016 = vadd.f32 %v2014, %v2015
          %v2017 = vrot.slane %v2016, 1
          %v2018 = vadd.f32 %v2016, %v2017
          %v2019 = vmul.f32 %v2018, %v1854
          %v2020 = vmul.f32 %v2010, %v2010
          %v2021 = vsub.f32 %v2019, %v2020
          %v2022 = vmax.f32 %v2021, 0.0
          %v2023 = vsub.f32 %v1998, %v2010
          %v2024 = vadd.f32 %v2022, 1e-05
          %v2025 = vrsqrt.pop %v2024
          %v2026 = vmul.f32 %v2023, %v2025
          %s2027 = scalar_lea.vmem %s6, 1
          %v2028 = vld [vmem:[%s2027] sm:$0x1]
          %v2030 = vlaneseq
          %v2031 = vshrl.u32 %v2030, 7
          %v2032 = vsub.s32 0, %v2031
          %v2033 = vrot.slane %v2028, %v2032
          %v2035 = vmul.f32 %v2026, %v2033
          %s2036 = scalar_lea.vmem %s7, 1
          %v2037 = vld [vmem:[%s2036] sm:$0x1]
          %v2039 = vlaneseq
          %v2040 = vshrl.u32 %v2039, 7
          %v2041 = vsub.s32 0, %v2040
          %v2042 = vrot.slane %v2037, %v2041
          %v2044 = vadd.f32 %v2035, %v2042
          %v2045 = vmax.f32 %v2044, 0.0
          %v2046 = vpack.c.bf16 %v2045, %v2045
          %s2047 = scalar_lea.vmem %s4, 128
          %v2048 = vld [vmem:[%s2047] sm:$0xf]
          %v2049 = vld [vmem:[%s2047 + $0x4] sm:$0xf]
          %v2050 = vld [vmem:[%s2047 + $0x8] sm:$0xf]
          %v2051 = vld [vmem:[%s2047 + $0xc] sm:$0xf]
          %v2052 = vld [vmem:[%s2047 + $0x10] sm:$0xf]
          %v2053 = vld [vmem:[%s2047 + $0x14] sm:$0xf]
          %v2054 = vld [vmem:[%s2047 + $0x18] sm:$0xf]
          %v2055 = vld [vmem:[%s2047 + $0x1c] sm:$0xf]
          %v2056 = vld [vmem:[%s2047 + $0x20] sm:$0xf]
          %v2057 = vld [vmem:[%s2047 + $0x24] sm:$0xf]
          %v2058 = vld [vmem:[%s2047 + $0x28] sm:$0xf]
          %v2059 = vld [vmem:[%s2047 + $0x2c] sm:$0xf]
          %v2060 = vld [vmem:[%s2047 + $0x30] sm:$0xf]
          %v2061 = vld [vmem:[%s2047 + $0x34] sm:$0xf]
          %v2062 = vld [vmem:[%s2047 + $0x38] sm:$0xf]
          %v2063 = vld [vmem:[%s2047 + $0x3c] sm:$0xf]
          %s2064 = scalar_lea.vmem %s5, 2
          %v2065 = vld [vmem:[%s2064] sm:$0x1]
          %v2067 = vlaneseq
          %v2068 = vshrl.u32 %v2067, 7
          %v2069 = vsub.s32 0, %v2068
          %v2070 = vrot.slane %v2065, %v2069
          %v2088 = vunpack.c.l.b16 %v2048
          %v2089 = vunpack.c.l.b16 %v2049
          %v2090 = vunpack.c.l.b16 %v2050
          %v2091 = vunpack.c.l.b16 %v2051
          %v2092 = vunpack.c.l.b16 %v2052
          %v2093 = vunpack.c.l.b16 %v2053
          %v2094 = vunpack.c.l.b16 %v2054
          %v2095 = vunpack.c.l.b16 %v2055
          %v2096 = vunpack.c.l.b16 %v2056
          %v2097 = vunpack.c.l.b16 %v2057
          %v2098 = vunpack.c.l.b16 %v2058
          %v2099 = vunpack.c.l.b16 %v2059
          %v2100 = vunpack.c.l.b16 %v2060
          %v2101 = vunpack.c.l.b16 %v2061
          %v2102 = vunpack.c.l.b16 %v2062
          %v2103 = vunpack.c.l.b16 %v2063
          %v2104 = vpack.c.b16 %v2089, %v2088
          %v2105 = vpack.c.b16 %v2091, %v2090
          %v2106 = vpack.c.b16 %v2093, %v2092
          %v2107 = vpack.c.b16 %v2095, %v2094
          %v2108 = vpack.c.b16 %v2097, %v2096
          %v2109 = vpack.c.b16 %v2099, %v2098
          %v2110 = vpack.c.b16 %v2101, %v2100
          %v2111 = vpack.c.b16 %v2103, %v2102
          %2120 = vmatprep.subr.bf16.mxu0 0
          %2121 = vmatpush1.bf16.msra.mxu0 %v2104
          %2122 = vmatprep.subr.bf16.mxu0 0
          %2123 = vmatpush1.bf16.msra.mxu0 %v2105
          %2124 = vmatprep.subr.bf16.mxu0 0
          %2125 = vmatpush1.bf16.msra.mxu0 %v2106
          %2126 = vmatprep.subr.bf16.mxu0 0
          %2127 = vmatpush1.bf16.msra.mxu0 %v2107
          %2128 = vmatprep.subr.bf16.mxu0 0
          %2129 = vmatpush1.bf16.msra.mxu0 %v2108
          %2130 = vmatprep.subr.bf16.mxu0 0
          %2131 = vmatpush1.bf16.msra.mxu0 %v2109
          %2132 = vmatprep.subr.bf16.mxu0 0
          %2133 = vmatpush1.bf16.msra.mxu0 %v2110
          %2134 = vmatprep.subr.bf16.mxu0 0
          %2135 = vmatpush1.bf16.msra.mxu0 %v2111
          %2136 = vmatprep.subr.bf16.mxu0 0
          %2137 = vmatpush1.bf16.msra.mxu0 0
          %2138 = vmatprep.subr.bf16.mxu0 0
          %2139 = vmatpush1.bf16.msra.mxu0 0
          %2140 = vmatprep.subr.bf16.mxu0 0
          %2141 = vmatpush1.bf16.msra.mxu0 0
          %2142 = vmatprep.subr.bf16.mxu0 0
          %2143 = vmatpush1.bf16.msra.mxu0 0
          %2144 = vmatprep.subr.bf16.mxu0 0
          %2145 = vmatpush1.bf16.msra.mxu0 0
          %2146 = vmatprep.subr.bf16.mxu0 0
          %2147 = vmatpush1.bf16.msra.mxu0 0
          %2148 = vmatprep.subr.bf16.mxu0 0
          %2149 = vmatpush1.bf16.msra.mxu0 0
          %2150 = vmatprep.subr.bf16.mxu0 0
          %2151 = vmatpush1.bf16.msra.mxu0 0
          %2152 = vmatprep.mubr.bf16.mxu0 0
          %2153 = vmatmul.mubr.bf16.gmra.mrb[0].mxu0 %v2046
          %v2154 = vpop.f32.mrb[0].mxu0
          %v2155 = vadd.f32 %v2070, %v2154
          %v2156 = vpop.f32.mrb[0].mxu0
          %v2157 = vpop.f32.mrb[0].mxu0
          %v2158 = vpop.f32.mrb[0].mxu0
          %2159 = vdwg.mxu0
          %v2160 = vsel %vm1846, %v2155, 0.0
          %v2161 = vrot.slane %v2160, 4
          %v2162 = vadd.f32 %v2160, %v2161
          %v2163 = vrot.slane %v2162, 2
          %v2164 = vadd.f32 %v2162, %v2163
          %v2165 = vrot.slane %v2164, 1
          %v2166 = vadd.f32 %v2164, %v2165
          %v2167 = vmul.f32 %v2166, %v1854
          %v2168 = vmul.f32 %v2155, %v2155
          %v2169 = vsel %vm1846, %v2168, 0.0
          %v2170 = vrot.slane %v2169, 4
          %v2171 = vadd.f32 %v2169, %v2170
          %v2172 = vrot.slane %v2171, 2
          %v2173 = vadd.f32 %v2171, %v2172
          %v2174 = vrot.slane %v2173, 1
          %v2175 = vadd.f32 %v2173, %v2174
          %v2176 = vmul.f32 %v2175, %v1854
          %v2177 = vmul.f32 %v2167, %v2167
          %v2178 = vsub.f32 %v2176, %v2177
          %v2179 = vmax.f32 %v2178, 0.0
          %v2180 = vsub.f32 %v2155, %v2167
          %v2181 = vadd.f32 %v2179, 1e-05
          %v2182 = vrsqrt.pop %v2181
          %v2183 = vmul.f32 %v2180, %v2182
          %s2184 = scalar_lea.vmem %s6, 2
          %v2185 = vld [vmem:[%s2184] sm:$0x1]
          %v2187 = vlaneseq
          %v2188 = vshrl.u32 %v2187, 7
          %v2189 = vsub.s32 0, %v2188
          %v2190 = vrot.slane %v2185, %v2189
          %v2192 = vmul.f32 %v2183, %v2190
          %s2193 = scalar_lea.vmem %s7, 2
          %v2194 = vld [vmem:[%s2193] sm:$0x1]
          %v2196 = vlaneseq
          %v2197 = vshrl.u32 %v2196, 7
          %v2198 = vsub.s32 0, %v2197
          %v2199 = vrot.slane %v2194, %v2198
          %v2201 = vadd.f32 %v2192, %v2199
          %v2202 = vmax.f32 %v2201, 0.0
          %2203 = vst [vmem:[#allocation6] sm:$0x3] %v2202
          %v2204 = vld [vmem:[%s8] sm:$0xf]
          %v2205 = vld [vmem:[%s8 + $0x4] sm:$0xf]
          %v2206 = vld [vmem:[%s8 + $0x8] sm:$0xf]
          %v2207 = vld [vmem:[%s8 + $0xc] sm:$0xf]
          %v2208 = vld [vmem:[%s8 + $0x10] sm:$0xf]
          %v2209 = vld [vmem:[%s8 + $0x14] sm:$0xf]
          %v2210 = vld [vmem:[%s8 + $0x18] sm:$0xf]
          %v2211 = vld [vmem:[%s8 + $0x1c] sm:$0xf]
          %v2212 = vld [vmem:[%s8 + $0x20] sm:$0xf]
          %v2213 = vld [vmem:[%s8 + $0x24] sm:$0xf]
          %v2214 = vld [vmem:[%s8 + $0x28] sm:$0xf]
          %v2215 = vld [vmem:[%s8 + $0x2c] sm:$0xf]
          %v2216 = vld [vmem:[%s8 + $0x30] sm:$0xf]
          %v2217 = vld [vmem:[%s8 + $0x34] sm:$0xf]
          %v2218 = vld [vmem:[%s8 + $0x38] sm:$0xf]
          %v2219 = vld [vmem:[%s8 + $0x3c] sm:$0xf]
          %v2220 = vld [vmem:[%s9] sm:$0x1]
          %v2222 = vlaneseq
          %v2223 = vshrl.u32 %v2222, 7
          %v2224 = vsub.s32 0, %v2223
          %v2225 = vrot.slane %v2220, %v2224
          %v2243 = vunpack.c.l.b16 %v2204
          %v2244 = vunpack.c.l.b16 %v2205
          %v2245 = vunpack.c.l.b16 %v2206
          %v2246 = vunpack.c.l.b16 %v2207
          %v2247 = vunpack.c.l.b16 %v2208
          %v2248 = vunpack.c.l.b16 %v2209
          %v2249 = vunpack.c.l.b16 %v2210
          %v2250 = vunpack.c.l.b16 %v2211
          %v2251 = vunpack.c.l.b16 %v2212
          %v2252 = vunpack.c.l.b16 %v2213
          %v2253 = vunpack.c.l.b16 %v2214
          %v2254 = vunpack.c.l.b16 %v2215
          %v2255 = vunpack.c.l.b16 %v2216
          %v2256 = vunpack.c.l.b16 %v2217
          %v2257 = vunpack.c.l.b16 %v2218
          %v2258 = vunpack.c.l.b16 %v2219
          %v2259 = vpack.c.b16 %v2244, %v2243
          %v2260 = vpack.c.b16 %v2246, %v2245
          %v2261 = vpack.c.b16 %v2248, %v2247
          %v2262 = vpack.c.b16 %v2250, %v2249
          %v2263 = vpack.c.b16 %v2252, %v2251
          %v2264 = vpack.c.b16 %v2254, %v2253
          %v2265 = vpack.c.b16 %v2256, %v2255
          %v2266 = vpack.c.b16 %v2258, %v2257
          %2275 = vmatprep.subr.bf16.mxu0 0
          %2276 = vmatpush1.bf16.msra.mxu0 %v2259
          %2277 = vmatprep.subr.bf16.mxu0 0
          %2278 = vmatpush1.bf16.msra.mxu0 %v2260
          %2279 = vmatprep.subr.bf16.mxu0 0
          %2280 = vmatpush1.bf16.msra.mxu0 %v2261
          %2281 = vmatprep.subr.bf16.mxu0 0
          %2282 = vmatpush1.bf16.msra.mxu0 %v2262
          %2283 = vmatprep.subr.bf16.mxu0 0
          %2284 = vmatpush1.bf16.msra.mxu0 %v2263
          %2285 = vmatprep.subr.bf16.mxu0 0
          %2286 = vmatpush1.bf16.msra.mxu0 %v2264
          %2287 = vmatprep.subr.bf16.mxu0 0
          %2288 = vmatpush1.bf16.msra.mxu0 %v2265
          %2289 = vmatprep.subr.bf16.mxu0 0
          %2290 = vmatpush1.bf16.msra.mxu0 %v2266
          %2291 = vmatprep.subr.bf16.mxu0 0
          %2292 = vmatpush1.bf16.msra.mxu0 0
          %2293 = vmatprep.subr.bf16.mxu0 0
          %2294 = vmatpush1.bf16.msra.mxu0 0
          %2295 = vmatprep.subr.bf16.mxu0 0
          %2296 = vmatpush1.bf16.msra.mxu0 0
          %2297 = vmatprep.subr.bf16.mxu0 0
          %2298 = vmatpush1.bf16.msra.mxu0 0
          %2299 = vmatprep.subr.bf16.mxu0 0
          %2300 = vmatpush1.bf16.msra.mxu0 0
          %2301 = vmatprep.subr.bf16.mxu0 0
          %2302 = vmatpush1.bf16.msra.mxu0 0
          %2303 = vmatprep.subr.bf16.mxu0 0
          %2304 = vmatpush1.bf16.msra.mxu0 0
          %2305 = vmatprep.subr.bf16.mxu0 0
          %2306 = vmatpush1.bf16.msra.mxu0 0
          %2307 = vmatprep.mubr.bf16.mxu0 0
          %2308 = vmatmul.mubr.bf16.gmra.mrb[0].mxu0 %v1734
          %v2309 = vpop.f32.mrb[0].mxu0
          %v2310 = vadd.f32 %v2225, %v2309
          %v2311 = vpop.f32.mrb[0].mxu0
          %v2312 = vpop.f32.mrb[0].mxu0
          %v2313 = vpop.f32.mrb[0].mxu0
          %2314 = vdwg.mxu0
          %2315 = vst [vmem:[#allocation8] sm:$0x3] %v2310
        $region80: #{simclr_forward.1} parent=59 // pred_fallthru
          _
        // Predicated region
        $region81: #{simclr_forward.1} parent=59 // pred_check
          %p2316 = pneg %p269
        $region82: #{simclr_forward.1} parent=59 // pred_check_branch
          %2318 = sbr.rel (%p2316) target = $region84
        $region83: #{simclr_forward.1} parent=59 // pred_region
          %s2320 = ssub.s32 32, 32
          %2321 = vsyncadd [#allocation7], %s2320
          %s2323 = sshll.u32 [#allocation6], 4
          %s2324 = int_to_ptr.vmem [resolvable:$true] %s2323
          %2326 = dma.vmem_to_hbm [thread:$0]  %s2324, 32, %s10, [#allocation7]
        $region84: #{simclr_forward.1} parent=59 // pred_fallthru
          _
        // Predicated region
        $region85: #{simclr_forward.1} parent=59 // pred_check
          %p2327 = pneg %p290
        $region86: #{simclr_forward.1} parent=59 // pred_check_branch
          %2329 = sbr.rel (%p2327) target = $region88
        $region87: #{simclr_forward.1} parent=59 // pred_region
          %s2331 = ssub.s32 32, 32
          %2332 = vsyncadd [#allocation9], %s2331
          %s2334 = sshll.u32 [#allocation8], 4
          %s2335 = int_to_ptr.vmem [resolvable:$true] %s2334
          %2337 = dma.vmem_to_hbm [thread:$0]  %s2335, 32, %s11, [#allocation9]
        $region88: #{simclr_forward.1} parent=59 // pred_fallthru
          _
        // Predicated region
        $region89: #{simclr_forward.1} parent=59 // pred_check
          %p2338 = pneg %p269
        $region90: #{simclr_forward.1} parent=59 // pred_check_branch
          %2340 = sbr.rel (%p2338) target = $region92
        $region91: #{simclr_forward.1} parent=59 // pred_region
          %2341 = dma.done [#allocation7], 32
        $region92: #{simclr_forward.1} parent=59 // pred_fallthru
          _
        // Predicated region
        $region93: #{simclr_forward.1} parent=59 // pred_check
          %p2342 = pneg %p290
        $region94: #{simclr_forward.1} parent=59 // pred_check_branch
          %2344 = sbr.rel (%p2342) target = $region96
        $region95: #{simclr_forward.1} parent=59 // pred_region
          %2345 = dma.done [#allocation9], 32
        $region96: #{simclr_forward.1} parent=59 // pred_fallthru
          _
      $region60: #{simclr_forward.1} parent=5 // pred_fallthru
        _
      %p2346 = scmp.le.s32.totalorder 2, %s20
      // Predicated region
      $region97: #{simclr_forward.1} parent=5 // pred_check
        %p2347 = pneg %p2346
      $region98: #{simclr_forward.1} parent=5 // pred_check_branch
        %2349 = sbr.rel (%p2347) target = $region100
      $region99: #{simclr_forward.1} parent=5 // pred_region
        %s2350 = ssub.s32 %s20, 2
      $region100: #{simclr_forward.1} parent=5 // pred_fallthru
        _
    $region6: #{simclr_forward.1} parent=1 // loop_footer
      %s24 = sadd.s32 1, %s20
    $region7: #{simclr_forward.1} parent=1 // loop_footer_branch
      %19 = sbr.rel target = $region3
    $region8: #{simclr_forward.1} parent=1 // loop_exit
      _
    %2351 = vsyncpa [#allocation7], 1
    %s2352 = scalar_lea.sflag [#allocation7], 1
    %2353 = vsyncpa %s2352, 1
    %2354 = vsyncpa [#allocation9], 1

</llo_original>
